<compile_context>
chip_gen: v6e
topology: v6e:2x2x1
jax: 0.10.0
libtpu: 0.0.40
codegen_flags: <defaults>
</compile_context>

<pallas_src>
import functools

import jax
import jax.numpy as jnp
from jax.experimental import pallas as pl
from jax.experimental.pallas import tpu as pltpu


def _round_up(x, m):
    return ((x + m - 1) // m) * m


# -----------------------------------------------------------------------------
# Fused kernel: per (b, i-tile, j-tile) block of edge pairs
#   x   = [edge | node_proj[i] | node_proj[j]]          (never materialized)
#   h   = relu(x @ W1 + b1); h = relu(h @ W2 + b2)      (node terms hoisted)
#   y   = (h + x) @ Wf + bf                             (node terms hoisted)
#   out = LayerNorm(y) * gamma + beta
# -----------------------------------------------------------------------------
def _edge_transition_kernel(edge_ref, h1i_ref, h1j_ref, yfi_ref, yfj_ref,
                            wh_ref, we_ref, b2_ref, lngb_ref, o_ref,
                            *, c, c8, hp, eps):
    ti, tj, _ = edge_ref.shape
    e_out = o_ref.shape[-1]
    f32 = jnp.float32
    cdt = wh_ref.dtype                   # MXU compute dtype (bf16 by default)

    # edge tile; cast to the MXU dtype IN-KERNEL (no wrapper-side HBM pass)
    e = edge_ref[...].reshape(ti * tj, c).astype(cdt)

    # ---- trunk layer 1: relu(x @ W1 + b1); concat folded into split matmuls,
    #      node-dependent terms (and b1) precomputed in the wrapper.
    h = jnp.dot(e, wh_ref[0:c, :], preferred_element_type=f32)     # (ti*tj, hp)
    h = (h.reshape(ti, tj, hp)
         + h1i_ref[...][:, None, :] + h1j_ref[...][None, :, :])
    h = jnp.maximum(h, 0.0).reshape(ti * tj, hp)

    # ---- trunk layer 2: relu(h @ W2 + b2)
    h = jnp.dot(h.astype(cdt), wh_ref[c8:c8 + hp, :],
                preferred_element_type=f32)
    h = jnp.maximum(h + b2_ref[...], 0.0)

    # ---- final layer with residual: y = (h + x) @ Wf + bf
    #      (node terms and bf precomputed in the wrapper).
    y = jnp.dot(h.astype(cdt), we_ref[0:hp, :], preferred_element_type=f32)
    y = y + jnp.dot(e, we_ref[hp:hp + c, :], preferred_element_type=f32)
    y3 = (y.reshape(ti, tj, e_out)
          + yfi_ref[...][:, None, :] + yfj_ref[...][None, :, :])

    # ---- LayerNorm over channels (f32 stats, one-pass sum / sum-of-squares)
    inv_e = 1.0 / e_out
    s1 = jnp.sum(y3, axis=-1, keepdims=True)
    s2 = jnp.sum(y3 * y3, axis=-1, keepdims=True)
    mu = s1 * inv_e
    var = jnp.maximum(s2 * inv_e - mu * mu, 0.0)
    out = ((y3 - mu) * jax.lax.rsqrt(var + eps) * lngb_ref[0:1, :]
           + lngb_ref[1:2, :])
    # TODO(synk): if production edge_embed_out stays < 128, relayout the LN /
    # store epilogue to a lane-dense (ti, tj*E) output block (today E<128 means
    # masked vst + 1/8-utilized LN vregs); needs a Mosaic-safe
    # (ti, tj, E) -> (ti, tj*E) relayout, so left out of this revision.
    o_ref[...] = out.astype(o_ref.dtype)


# -----------------------------------------------------------------------------
# Forward wrapper
# -----------------------------------------------------------------------------
@functools.partial(jax.jit, static_argnames=("ti", "tj", "eps", "compute_dtype"))
def edge_transition_forward(node_embed, edge_embed, params, *,
                            ti=32, tj=32, eps=1e-5,
                            compute_dtype=jnp.bfloat16):
    out_dtype = edge_embed.dtype
    B, N, _ = node_embed.shape
    C = edge_embed.shape[-1]
    bias = params["w_init"].shape[1]
    H = 2 * bias + C
    E = params["wf"].shape[1]
    assert params["w1"].shape == (H, H)

    # tile sizes: multiples of 8 sublanes, clamped to padded N
    n8 = _round_up(N, 8)
    ti = min(_round_up(ti, 8), n8)
    tj = min(_round_up(tj, 8), n8)
    np_i = _round_up(N, ti)
    np_j = _round_up(N, tj)
    np_n = max(np_i, np_j)

    hp = _round_up(H, 128)      # hidden padded to a lane-dense 128 multiple
    c8 = _round_up(C, 8)        # 8-aligned row offset inside packed weights

    # ---- hoisted node-side work (tiny; plain jnp, XLA fuses). All f32.
    w1 = params["w1"]
    wf = params["wf"]
    node_proj = node_embed @ params["w_init"] + params["b_init"]    # (B, N, bias)
    w1i = jnp.pad(w1[C:C + bias], ((0, 0), (0, hp - H)))
    w1j = jnp.pad(w1[C + bias:], ((0, 0), (0, hp - H)))
    b1 = jnp.pad(params["b1"], (0, hp - H))
    h1i = node_proj @ w1i + b1                                      # (B, N, hp)
    h1j = node_proj @ w1j                                           # (B, N, hp)
    yfi = node_proj @ wf[C:C + bias] + params["bf"]                 # (B, N, E)
    yfj = node_proj @ wf[C + bias:]                                 # (B, N, E)

    # ---- packed grid-invariant weights (2 arrays instead of 8+ specs)
    cdt = compute_dtype
    w1e = jnp.pad(w1[:C], ((0, c8 - C), (0, hp - H)))               # (c8, hp)
    w2 = jnp.pad(params["w2"], ((0, hp - H), (0, hp - H)))          # (hp, hp)
    pack_wh = jnp.concatenate([w1e, w2], axis=0).astype(cdt)        # (c8+hp, hp)
    wfh = jnp.pad(wf, ((0, hp - H), (0, 0)))                        # (hp, E)
    wfe = jnp.pad(wf[:C], ((0, c8 - C), (0, 0)))                    # (c8, E)
    pack_we = jnp.concatenate([wfh, wfe], axis=0).astype(cdt)       # (hp+c8, E)
    b2 = jnp.pad(params["b2"], (0, hp - H)).reshape(1, hp)
    lngb = jnp.stack([params["ln_gamma"], params["ln_beta"]])       # (2, E)

    # ---- pad N to tile multiples (tail rows are sliced off afterwards)
    if np_i > N or np_j > N:
        edge_embed = jnp.pad(edge_embed,
                             ((0, 0), (0, np_i - N), (0, np_j - N), (0, 0)))
    if np_n > N:
        pad = ((0, 0), (0, np_n - N), (0, 0))
        h1i, h1j, yfi, yfj = (jnp.pad(t, pad) for t in (h1i, h1j, yfi, yfj))

    edge_bytes = edge_embed.dtype.itemsize
    cdt_bytes = jnp.dtype(cdt).itemsize
    out_bytes = jnp.dtype(out_dtype).itemsize

    # ---- cost estimate (lets XLA schedule the surrounding pad/slice/proj ops)
    rows = B * np_i * np_j
    flops = 2 * rows * (C * hp + hp * hp + hp * E + C * E)
    bytes_accessed = (rows * C * edge_bytes + rows * E * out_bytes
                      + 2 * B * np_n * (hp + E) * 4
                      + ((c8 + hp) * hp + (hp + c8) * E) * cdt_bytes)
    cost = pl.CostEstimate(flops=int(flops), transcendentals=int(rows),
                           bytes_accessed=int(bytes_accessed))

    # ---- VMEM budget: double-buffered blocks + live f32 intermediates, +50%
    # slack; floored at 32 MiB (== v6e/v7x scoped default, above v5e's 16 MiB).
    vmem = (2 * ti * tj * (C * edge_bytes + E * out_bytes)
            + 2 * (ti + tj) * (hp + E) * 4
            + 2 * ((c8 + hp) * hp + (hp + c8) * E) * cdt_bytes
            + 2 * (hp + 2 * E) * 4
            + ti * tj * (C * cdt_bytes + 3 * hp * 4 + 3 * E * 4))
    vmem_limit = min(max(int(vmem * 1.5), 32 * 1024 * 1024),
                     100 * 1024 * 1024)

    def edge_map(b, i, j): return (b, i, j, 0)
    def ni_map(b, i, j): return (b, i, 0)
    def nj_map(b, i, j): return (b, j, 0)
    def w_map(b, i, j): return (0, 0)

    kernel = functools.partial(_edge_transition_kernel,
                               c=C, c8=c8, hp=hp, eps=eps)
    out = pl.pallas_call(
        kernel,
        out_shape=jax.ShapeDtypeStruct((B, np_i, np_j, E), out_dtype),
        grid_spec=pl.GridSpec(
            grid=(B, np_i // ti, np_j // tj),
            in_specs=[
                pl.BlockSpec((None, ti, tj, C), edge_map),
                pl.BlockSpec((None, ti, hp), ni_map),
                pl.BlockSpec((None, tj, hp), nj_map),
                pl.BlockSpec((None, ti, E), ni_map),
                pl.BlockSpec((None, tj, E), nj_map),
                pl.BlockSpec((c8 + hp, hp), w_map),
                pl.BlockSpec((hp + c8, E), w_map),
                pl.BlockSpec((1, hp), w_map),
                pl.BlockSpec((2, E), w_map),
            ],
            out_specs=pl.BlockSpec((None, ti, tj, E), edge_map),
        ),
        compiler_params=pltpu.CompilerParams(
            dimension_semantics=("parallel", "parallel", "parallel"),
            vmem_limit_bytes=vmem_limit),
        cost_estimate=cost,
    )(edge_embed, h1i, h1j, yfi, yfj, pack_wh, pack_we, b2, lngb)

    if np_i > N or np_j > N:
        out = out[:, :N, :N, :]
    return out


# -----------------------------------------------------------------------------
# Pure-JAX reference for verification (mirrors the PyTorch module)
# -----------------------------------------------------------------------------
def edge_transition_reference(node_embed, edge_embed, params, eps=1e-5):
    B, N, _ = node_embed.shape
    node_proj = node_embed @ params["w_init"] + params["b_init"]
    bias_i = jnp.tile(node_proj[:, :, None, :], (1, 1, N, 1))
    bias_j = jnp.tile(node_proj[:, None, :, :], (1, N, 1, 1))
    x = jnp.concatenate([edge_embed, bias_i, bias_j], axis=-1)
    x = x.reshape(B * N * N, -1)
    h = jnp.maximum(x @ params["w1"] + params["b1"], 0.0)
    h = jnp.maximum(h @ params["w2"] + params["b2"], 0.0)
    y = (h + x) @ params["wf"] + params["bf"]
    mu = jnp.mean(y, axis=-1, keepdims=True)
    var = jnp.mean((y - mu) ** 2, axis=-1, keepdims=True)
    out = (y - mu) / jnp.sqrt(var + eps) * params["ln_gamma"] + params["ln_beta"]
    return out.reshape(B, N, N, -1)


# -----------------------------------------------------------------------------
# Main
# -----------------------------------------------------------------------------
if __name__ == "__main__":
    B, N = 2, 8
    node_embed_size = 32
    edge_embed_in = 8
    edge_embed_out = 16
    node_dilation = 2
    bias_embed = node_embed_size // node_dilation            # 16
    hidden = bias_embed * 2 + edge_embed_in                  # 40

    key = jax.random.PRNGKey(0)
    ks = jax.random.split(key, 8)

    # NOTE: the PyTorch module zero-inits the final layer ('final' init), which
    # would make the output trivially LayerNorm(0); small random weights are
    # used instead so the whole kernel path is exercised end-to-end.
    def w_init(k, fan_in, fan_out):
        return (jax.random.normal(k, (fan_in, fan_out), jnp.float32)
                / jnp.sqrt(jnp.float32(fan_in)))

    params = {
        "w_init": w_init(ks[0], node_embed_size, bias_embed),
        "b_init": jnp.zeros((bias_embed,), jnp.float32),
        "w1": w_init(ks[1], hidden, hidden),
        "b1": jnp.zeros((hidden,), jnp.float32),
        "w2": w_init(ks[2], hidden, hidden),
        "b2": jnp.zeros((hidden,), jnp.float32),
        "wf": w_init(ks[3], hidden, edge_embed_out),
        "bf": jnp.zeros((edge_embed_out,), jnp.float32),
        "ln_gamma": jnp.ones((edge_embed_out,), jnp.float32),
        "ln_beta": jnp.zeros((edge_embed_out,), jnp.float32),
    }

    node_embed = jax.random.normal(ks[4], (B, N, node_embed_size), jnp.float32)
    edge_embed = jax.random.normal(ks[5], (B, N, N, edge_embed_in), jnp.float32)

    ref = edge_transition_reference(node_embed, edge_embed, params)

    # f32 compute path (tight tolerance vs. reference)
    out_f32 = edge_transition_forward(node_embed, edge_embed, params,
                                      compute_dtype=jnp.float32)
    out_f32 = jax.block_until_ready(out_f32)
    assert out_f32.shape == (B, N, N, edge_embed_out), out_f32.shape
    assert jnp.allclose(out_f32, ref, atol=1e-4, rtol=1e-4), (
        float(jnp.max(jnp.abs(out_f32 - ref))))

    # default bf16 MXU path (v5e/v6e/v7x peak); f32 accumulation + f32
    # LayerNorm + f32 hoisted node terms, so it stays close to the reference.
    out = edge_transition_forward(node_embed, edge_embed, params)
    out = jax.block_until_ready(out)
    assert out.shape == (B, N, N, edge_embed_out), out.shape
    assert jnp.allclose(out, ref, atol=1e-1, rtol=1e-1), (
        float(jnp.max(jnp.abs(out - ref))))

    print("KERNEL_OK")
</pallas_src>

<mosaic_0001>
module attributes {stable_mosaic.version = 11 : i64} {
  func.func @_edge_transition_kernel(%arg0: i32, %arg1: i32, %arg2: i32, %arg3: memref<1x8x8x8xf32, #tpu.memory_space<vmem>>, %arg4: memref<1x8x128xf32, #tpu.memory_space<vmem>>, %arg5: memref<1x8x128xf32, #tpu.memory_space<vmem>>, %arg6: memref<1x8x16xf32, #tpu.memory_space<vmem>>, %arg7: memref<1x8x16xf32, #tpu.memory_space<vmem>>, %arg8: memref<136x128xf32, #tpu.memory_space<vmem>>, %arg9: memref<136x16xf32, #tpu.memory_space<vmem>>, %arg10: memref<1x128xf32, #tpu.memory_space<vmem>>, %arg11: memref<2x16xf32, #tpu.memory_space<vmem>>, %arg12: memref<1x8x8x16xf32, #tpu.memory_space<vmem>>) attributes {dimension_semantics = [#tpu.dimension_semantics<parallel>, #tpu.dimension_semantics<parallel>, #tpu.dimension_semantics<parallel>], iteration_bounds = array<i64: 2, 1, 1>, scalar_prefetch = 0 : i64, scratch_operands = 0 : i64, tpu.core_type = #tpu.core_type<tc>, window_params = [{transform_indices = @transform_0, window_bounds = array<i64: 1, 8, 8, 8>}, {transform_indices = @transform_1, window_bounds = array<i64: 1, 8, 128>}, {transform_indices = @transform_2, window_bounds = array<i64: 1, 8, 128>}, {transform_indices = @transform_3, window_bounds = array<i64: 1, 8, 16>}, {transform_indices = @transform_4, window_bounds = array<i64: 1, 8, 16>}, {pipeline_mode = #tpu.pipeline_mode<synchronous>, transform_indices = @transform_5, window_bounds = array<i64: 136, 128>}, {pipeline_mode = #tpu.pipeline_mode<synchronous>, transform_indices = @transform_6, window_bounds = array<i64: 136, 16>}, {pipeline_mode = #tpu.pipeline_mode<synchronous>, transform_indices = @transform_7, window_bounds = array<i64: 1, 128>}, {pipeline_mode = #tpu.pipeline_mode<synchronous>, transform_indices = @transform_8, window_bounds = array<i64: 2, 16>}, {transform_indices = @transform_9, window_bounds = array<i64: 1, 8, 8, 16>}]} {
    %c0 = arith.constant 0 : index
    %c0_0 = arith.constant 0 : index
    %c0_1 = arith.constant 0 : index
    %c0_2 = arith.constant 0 : index
    %0 = vector.load %arg3[%c0, %c0_0, %c0_1, %c0_2] : memref<1x8x8x8xf32, #tpu.memory_space<vmem>>, vector<1x8x8x8xf32>
    %1 = vector.shape_cast %0 : vector<1x8x8x8xf32> to vector<8x8x8xf32>
    %2 = vector.shape_cast %1 : vector<8x8x8xf32> to vector<64x8xf32>
    %c0_3 = arith.constant 0 : index
    %c0_4 = arith.constant 0 : index
    %3 = vector.load %arg8[%c0_3, %c0_4] : memref<136x128xf32, #tpu.memory_space<vmem>>, vector<8x128xf32>
    %cst = arith.constant dense<0.000000e+00> : vector<64x128xf32>
    %4 = tpu.matmul %2, %3, %cst {dimension_numbers = #tpu.dot_dimension_numbers<[1], [0], [0], [1], [0, 0, 1, 1], [], []>} : vector<64x8xf32>, vector<8x128xf32>, vector<64x128xf32> -> vector<64x128xf32>
    %5 = vector.shape_cast %4 : vector<64x128xf32> to vector<8x8x128xf32>
    %c0_5 = arith.constant 0 : index
    %c0_6 = arith.constant 0 : index
    %c0_7 = arith.constant 0 : index
    %6 = vector.load %arg4[%c0_5, %c0_6, %c0_7] : memref<1x8x128xf32, #tpu.memory_space<vmem>>, vector<1x8x128xf32>
    %7 = vector.shape_cast %6 : vector<1x8x128xf32> to vector<8x128xf32>
    %8 = vector.shape_cast %7 : vector<8x128xf32> to vector<8x1x128xf32>
    %9 = vector.broadcast %8 : vector<8x1x128xf32> to vector<8x8x128xf32>
    %10 = arith.addf %5, %9 : vector<8x8x128xf32>
    %c0_8 = arith.constant 0 : index
    %c0_9 = arith.constant 0 : index
    %c0_10 = arith.constant 0 : index
    %11 = vector.load %arg5[%c0_8, %c0_9, %c0_10] : memref<1x8x128xf32, #tpu.memory_space<vmem>>, vector<1x8x128xf32>
    %12 = vector.shape_cast %11 : vector<1x8x128xf32> to vector<8x128xf32>
    %13 = vector.shape_cast %12 : vector<8x128xf32> to vector<1x8x128xf32>
    %14 = vector.broadcast %13 : vector<1x8x128xf32> to vector<8x8x128xf32>
    %15 = arith.addf %10, %14 : vector<8x8x128xf32>
    %cst_11 = arith.constant 0.000000e+00 : f32
    %16 = vector.broadcast %cst_11 : f32 to vector<8x8x128xf32>
    %17 = arith.maximumf %15, %16 : vector<8x8x128xf32>
    %18 = vector.shape_cast %17 : vector<8x8x128xf32> to vector<64x128xf32>
    %c8 = arith.constant 8 : index
    %c0_12 = arith.constant 0 : index
    %19 = vector.load %arg8[%c8, %c0_12] : memref<136x128xf32, #tpu.memory_space<vmem>>, vector<128x128xf32>
    %cst_13 = arith.constant dense<0.000000e+00> : vector<64x128xf32>
    %20 = tpu.matmul %18, %19, %cst_13 {dimension_numbers = #tpu.dot_dimension_numbers<[1], [0], [0], [1], [0, 0, 1, 1], [], []>} : vector<64x128xf32>, vector<128x128xf32>, vector<64x128xf32> -> vector<64x128xf32>
    %c0_14 = arith.constant 0 : index
    %c0_15 = arith.constant 0 : index
    %21 = vector.load %arg10[%c0_14, %c0_15] : memref<1x128xf32, #tpu.memory_space<vmem>>, vector<1x128xf32>
    %22 = vector.broadcast %21 : vector<1x128xf32> to vector<64x128xf32>
    %23 = arith.addf %20, %22 : vector<64x128xf32>
    %cst_16 = arith.constant 0.000000e+00 : f32
    %24 = vector.broadcast %cst_16 : f32 to vector<64x128xf32>
    %25 = arith.maximumf %23, %24 : vector<64x128xf32>
    %c0_17 = arith.constant 0 : index
    %c0_18 = arith.constant 0 : index
    %26 = vector.load %arg9[%c0_17, %c0_18] : memref<136x16xf32, #tpu.memory_space<vmem>>, vector<128x16xf32>
    %cst_19 = arith.constant dense<0.000000e+00> : vector<64x16xf32>
    %27 = tpu.matmul %25, %26, %cst_19 {dimension_numbers = #tpu.dot_dimension_numbers<[1], [0], [0], [1], [0, 0, 1, 1], [], []>} : vector<64x128xf32>, vector<128x16xf32>, vector<64x16xf32> -> vector<64x16xf32>
    %c128 = arith.constant 128 : index
    %c0_20 = arith.constant 0 : index
    %28 = vector.load %arg9[%c128, %c0_20] : memref<136x16xf32, #tpu.memory_space<vmem>>, vector<8x16xf32>
    %cst_21 = arith.constant dense<0.000000e+00> : vector<64x16xf32>
    %29 = tpu.matmul %2, %28, %cst_21 {dimension_numbers = #tpu.dot_dimension_numbers<[1], [0], [0], [1], [0, 0, 1, 1], [], []>} : vector<64x8xf32>, vector<8x16xf32>, vector<64x16xf32> -> vector<64x16xf32>
    %30 = arith.addf %27, %29 : vector<64x16xf32>
    %31 = vector.shape_cast %30 : vector<64x16xf32> to vector<8x8x16xf32>
    %c0_22 = arith.constant 0 : index
    %c0_23 = arith.constant 0 : index
    %c0_24 = arith.constant 0 : index
    %32 = vector.load %arg6[%c0_22, %c0_23, %c0_24] : memref<1x8x16xf32, #tpu.memory_space<vmem>>, vector<1x8x16xf32>
    %33 = vector.shape_cast %32 : vector<1x8x16xf32> to vector<8x16xf32>
    %34 = vector.shape_cast %33 : vector<8x16xf32> to vector<8x1x16xf32>
    %35 = vector.broadcast %34 : vector<8x1x16xf32> to vector<8x8x16xf32>
    %36 = arith.addf %31, %35 : vector<8x8x16xf32>
    %c0_25 = arith.constant 0 : index
    %c0_26 = arith.constant 0 : index
    %c0_27 = arith.constant 0 : index
    %37 = vector.load %arg7[%c0_25, %c0_26, %c0_27] : memref<1x8x16xf32, #tpu.memory_space<vmem>>, vector<1x8x16xf32>
    %38 = vector.shape_cast %37 : vector<1x8x16xf32> to vector<8x16xf32>
    %39 = vector.shape_cast %38 : vector<8x16xf32> to vector<1x8x16xf32>
    %40 = vector.broadcast %39 : vector<1x8x16xf32> to vector<8x8x16xf32>
    %41 = arith.addf %36, %40 : vector<8x8x16xf32>
    %cst_28 = arith.constant dense<0.000000e+00> : vector<8x8xf32>
    %42 = vector.multi_reduction <add>, %41, %cst_28 [2] : vector<8x8x16xf32> to vector<8x8xf32>
    %43 = vector.shape_cast %42 : vector<8x8xf32> to vector<8x8x1xf32>
    %44 = arith.mulf %41, %41 : vector<8x8x16xf32>
    %cst_29 = arith.constant dense<0.000000e+00> : vector<8x8xf32>
    %45 = vector.multi_reduction <add>, %44, %cst_29 [2] : vector<8x8x16xf32> to vector<8x8xf32>
    %46 = vector.shape_cast %45 : vector<8x8xf32> to vector<8x8x1xf32>
    %cst_30 = arith.constant 6.250000e-02 : f32
    %47 = vector.broadcast %cst_30 : f32 to vector<8x8x1xf32>
    %48 = arith.mulf %43, %47 : vector<8x8x1xf32>
    %cst_31 = arith.constant 6.250000e-02 : f32
    %49 = vector.broadcast %cst_31 : f32 to vector<8x8x1xf32>
    %50 = arith.mulf %46, %49 : vector<8x8x1xf32>
    %51 = arith.mulf %48, %48 : vector<8x8x1xf32>
    %52 = arith.subf %50, %51 : vector<8x8x1xf32>
    %cst_32 = arith.constant 0.000000e+00 : f32
    %53 = vector.broadcast %cst_32 : f32 to vector<8x8x1xf32>
    %54 = arith.maximumf %52, %53 : vector<8x8x1xf32>
    %55 = vector.broadcast %48 : vector<8x8x1xf32> to vector<8x8x16xf32>
    %56 = arith.subf %41, %55 : vector<8x8x16xf32>
    %cst_33 = arith.constant 9.99999974E-6 : f32
    %57 = vector.broadcast %cst_33 : f32 to vector<8x8x1xf32>
    %58 = arith.addf %54, %57 : vector<8x8x1xf32>
    %59 = math.rsqrt %58 : vector<8x8x1xf32>
    %60 = vector.broadcast %59 : vector<8x8x1xf32> to vector<8x8x16xf32>
    %61 = arith.mulf %56, %60 : vector<8x8x16xf32>
    %c0_34 = arith.constant 0 : index
    %c0_35 = arith.constant 0 : index
    %62 = vector.load %arg11[%c0_34, %c0_35] : memref<2x16xf32, #tpu.memory_space<vmem>>, vector<1x16xf32>
    %63 = vector.shape_cast %62 : vector<1x16xf32> to vector<1x1x16xf32>
    %64 = vector.broadcast %63 : vector<1x1x16xf32> to vector<8x8x16xf32>
    %65 = arith.mulf %61, %64 : vector<8x8x16xf32>
    %c1 = arith.constant 1 : index
    %c0_36 = arith.constant 0 : index
    %66 = vector.load %arg11[%c1, %c0_36] : memref<2x16xf32, #tpu.memory_space<vmem>>, vector<1x16xf32>
    %67 = vector.shape_cast %66 : vector<1x16xf32> to vector<1x1x16xf32>
    %68 = vector.broadcast %67 : vector<1x1x16xf32> to vector<8x8x16xf32>
    %69 = arith.addf %65, %68 : vector<8x8x16xf32>
    %c0_37 = arith.constant 0 : index
    %c0_38 = arith.constant 0 : index
    %c0_39 = arith.constant 0 : index
    %c0_40 = arith.constant 0 : index
    %70 = vector.load %arg12[%c0_37, %c0_38, %c0_39, %c0_40] : memref<1x8x8x16xf32, #tpu.memory_space<vmem>>, vector<1x8x8x16xf32>
    %71 = vector.shape_cast %70 : vector<1x8x8x16xf32> to vector<8x8x16xf32>
    %72 = vector.shape_cast %69 : vector<8x8x16xf32> to vector<1x8x8x16xf32>
    tpu.vector_store %arg12[%c0_37, %c0_38, %c0_39, %c0_40], %72 {strides = array<i32>} : memref<1x8x8x16xf32, #tpu.memory_space<vmem>>, vector<1x8x8x16xf32>,
    return
  }
  func.func @transform_0(%arg0: i32, %arg1: i32, %arg2: i32) -> (i32, i32, i32, i32) {
    %c0_i32 = arith.constant 0 : i32
    %c0_i32_0 = arith.constant 0 : i32
    return %arg0, %arg1, %arg2, %c0_i32 : i32, i32, i32, i32
  }
  func.func @transform_1(%arg0: i32, %arg1: i32, %arg2: i32) -> (i32, i32, i32) {
    %c0_i32 = arith.constant 0 : i32
    %c0_i32_0 = arith.constant 0 : i32
    return %arg0, %arg1, %c0_i32 : i32, i32, i32
  }
  func.func @transform_2(%arg0: i32, %arg1: i32, %arg2: i32) -> (i32, i32, i32) {
    %c0_i32 = arith.constant 0 : i32
    %c0_i32_0 = arith.constant 0 : i32
    return %arg0, %arg2, %c0_i32 : i32, i32, i32
  }
  func.func @transform_3(%arg0: i32, %arg1: i32, %arg2: i32) -> (i32, i32, i32) {
    %c0_i32 = arith.constant 0 : i32
    %c0_i32_0 = arith.constant 0 : i32
    return %arg0, %arg1, %c0_i32 : i32, i32, i32
  }
  func.func @transform_4(%arg0: i32, %arg1: i32, %arg2: i32) -> (i32, i32, i32) {
    %c0_i32 = arith.constant 0 : i32
    %c0_i32_0 = arith.constant 0 : i32
    return %arg0, %arg2, %c0_i32 : i32, i32, i32
  }
  func.func @transform_5(%arg0: i32, %arg1: i32, %arg2: i32) -> (i32, i32) {
    %c0_i32 = arith.constant 0 : i32
    %c0_i32_0 = arith.constant 0 : i32
    %c0_i32_1 = arith.constant 0 : i32
    return %c0_i32, %c0_i32_0 : i32, i32
  }
  func.func @transform_6(%arg0: i32, %arg1: i32, %arg2: i32) -> (i32, i32) {
    %c0_i32 = arith.constant 0 : i32
    %c0_i32_0 = arith.constant 0 : i32
    %c0_i32_1 = arith.constant 0 : i32
    return %c0_i32, %c0_i32_0 : i32, i32
  }
  func.func @transform_7(%arg0: i32, %arg1: i32, %arg2: i32) -> (i32, i32) {
    %c0_i32 = arith.constant 0 : i32
    %c0_i32_0 = arith.constant 0 : i32
    %c0_i32_1 = arith.constant 0 : i32
    return %c0_i32, %c0_i32_0 : i32, i32
  }
  func.func @transform_8(%arg0: i32, %arg1: i32, %arg2: i32) -> (i32, i32) {
    %c0_i32 = arith.constant 0 : i32
    %c0_i32_0 = arith.constant 0 : i32
    %c0_i32_1 = arith.constant 0 : i32
    return %c0_i32, %c0_i32_0 : i32, i32
  }
  func.func @transform_9(%arg0: i32, %arg1: i32, %arg2: i32) -> (i32, i32, i32, i32) {
    %c0_i32 = arith.constant 0 : i32
    %c0_i32_0 = arith.constant 0 : i32
    return %arg0, %arg1, %arg2, %c0_i32 : i32, i32, i32, i32
  }
}

</mosaic_0001>

<llo_original>
// kernel: edge_transition_forward.1
$region0: #{edge_transition_forward.1}
  #allocation0 [shape = 'u32[]', space=smem, size = 0x4, offset = 0x4, fixed_abs, tag = 'smem constant byte address 0x4 - core index']
  #allocation1 [shape = 'u32[144,128]{1,0:T(1,128)}', space=vmem, size = 0x12000, scoped, tag = 'internal scratch']
  %s0 = inlined_call_operand.vmem [shape: f32[2,8,8,8], index: 0, kind: input, shape index: {}]
  %s1 = inlined_call_operand.vmem [shape: f32[2,8,128], index: 1, kind: input, shape index: {}]
  %s2 = inlined_call_operand.vmem [shape: f32[2,8,128], index: 2, kind: input, shape index: {}]
  %s3 = inlined_call_operand.vmem [shape: f32[2,8,16], index: 3, kind: input, shape index: {}]
  %s4 = inlined_call_operand.vmem [shape: f32[2,8,16], index: 4, kind: input, shape index: {}]
  %s5 = inlined_call_operand.vmem [shape: f32[136,128], index: 5, kind: input, shape index: {}]
  %s6 = inlined_call_operand.vmem [shape: f32[136,16], index: 6, kind: input, shape index: {}]
  %s7 = inlined_call_operand.vmem [shape: f32[1,128], index: 7, kind: input, shape index: {}]
  %s8 = inlined_call_operand.vmem [shape: f32[2,16], index: 8, kind: input, shape index: {}]
  %s9 = inlined_call_operand.hbm [shape: f32[2,8,8,16], index: 9, kind: output, shape index: {}]
  %s10 = sld [smem:[#allocation0]]
  $region69: #{edge_transition_forward.1} parent=0
    _
  %s12 = ssub.s32 1, %s10
  %s13 = scalar_select 0, %s12, %s10
  $region1: #{edge_transition_forward.1} parent=0
    #allocation2 [shape = 'u8[65536]{0}', space=vmem, size = 0x10000, scoped, tag = 'output window, operand 0']
    #allocation3 [shape = 's32[2]{0}', space=sflag, size = 0x8, scoped, tag = 'scoped memory for edge_transition_forward.1']
    %14 = vsyncpa [#allocation3], 0
    %s15 = scalar_lea.sflag [#allocation3], 1
    %16 = vsyncpa %s15, 0
    loop: start=0, step=1, limit=4
    $region2: #{edge_transition_forward.1} parent=1 // loop_pre_header
      _
    $region3: #{edge_transition_forward.1} parent=1 // loop_header
      %s18 = sphi 0, %s22
      %p19 = scmp.ge.s32.totalorder %s18, 4
      %s25 = sphi 0, %s44
      %s26 = sphi 0, %s40
      %s27 = sphi 0, %s36
      %s28 = sphi 0, %s25
      %s29 = sphi 0, %s26
      %s30 = sphi 0, %s27
      %s31 = sphi 0, %s28
      %s32 = sphi 0, %s29
      %s33 = sphi 0, %s30
      %s51 = sphi 0, %s53
      %s54 = sphi 0, %s51
      %s55 = sphi 0, %s54
      %s71 = sphi 0, %s55
      %s79 = sphi 0, %s81
      %s82 = sphi 0, %s79
      %s83 = sphi 0, %s82
      %s99 = sphi 0, %s83
      %s107 = sphi 0, %s109
      %s110 = sphi 0, %s107
      %s111 = sphi 0, %s110
      %s127 = sphi 0, %s111
      %s135 = sphi 0, %s137
      %s138 = sphi 0, %s135
      %s139 = sphi 0, %s138
      %s155 = sphi 0, %s139
      %s163 = sphi 0, %s165
      %s166 = sphi 0, %s163
      %s167 = sphi 0, %s166
      %s183 = sphi 0, %s167
      %s187 = sphi 0, %s187
      %s189 = sphi 0, %s187
      %s190 = sphi 0, %s189
      %s204 = sphi 0, %s190
      %s208 = sphi 0, %s208
      %s210 = sphi 0, %s208
      %s211 = sphi 0, %s210
      %s225 = sphi 0, %s211
      %s229 = sphi 0, %s229
      %s231 = sphi 0, %s229
      %s232 = sphi 0, %s231
      %s246 = sphi 0, %s232
      %s250 = sphi 0, %s250
      %s252 = sphi 0, %s250
      %s253 = sphi 0, %s252
      %s267 = sphi 0, %s253
      %s277 = sphi 0, %s279
      %s280 = sphi 0, %s277
      %s281 = sphi 0, %s280
      %s297 = sphi 0, %s281
    $region4: #{edge_transition_forward.1} parent=1 // loop_header_branch
      %21 = sbr.rel (%p19) target = $region8
    $region5: #{edge_transition_forward.1} parent=1 // loop_body
      %s23 = ssub.s32 %s18, 1
      %s24 = ssub.s32 %s18, 2
      %s34 = sadd.s32 1, %s27
      %p35 = scmp.ge.s32.totalorder %s34, 1
      %s36 = scalar_select %p35, 0, %s34
      %s37 = sadd.s32 1, %s26
      %s38 = scalar_select %p35, %s37, %s26
      %p39 = scmp.ge.s32.totalorder %s38, 1
      %s40 = scalar_select %p39, 0, %s38
      %s41 = sadd.s32 1, %s25
      %s42 = scalar_select %p39, %s41, %s25
      %p43 = scmp.ge.s32.totalorder %s42, 2
      %s44 = scalar_select %p43, 0, %s42
      %s45 = ssub.s32 %s25, %s44
      %s46 = ssub.s32 %s26, %s40
      %s47 = sor.u32 %s45, %s46
      %s48 = ssub.s32 %s27, %s36
      %s49 = sor.u32 %s47, %s48
      %p50 = scmp.eq.s32.totalorder %s49, 0
      %s52 = sadd.s32 %s51, 1
      %s53 = scalar_select %p50, %s51, %s52
      %p56 = pneg %p50
      %p57 = scmp.eq.s32.totalorder %s18, 1
      %p58 = por %p56, %p57
      %p59 = scmp.ne.s32.totalorder %s51, %s54
      %p60 = scmp.eq.s32.totalorder %s18, 0
      %p61 = por %p59, %p60
      %p62 = scmp.ne.s32.totalorder %s51, %s54
      %p63 = scmp.eq.s32.totalorder %s23, 1
      %p64 = por %p62, %p63
      %p65 = scmp.ne.s32.totalorder %s54, %s55
      %p66 = scmp.eq.s32.totalorder %s23, 0
      %p67 = por %p65, %p66
      %p68 = scmp.ne.s32.totalorder %s54, %s55
      %p69 = scmp.eq.s32.totalorder %s24, 1
      %p70 = por %p68, %p69
      %p72 = scmp.ne.s32.totalorder %s55, %s71
      %p73 = scmp.eq.s32.totalorder %s24, 0
      %p74 = por %p72, %p73
      %s75 = ssub.s32 %s25, %s44
      %s76 = ssub.s32 %s26, %s40
      %s77 = sor.u32 %s75, %s76
      %p78 = scmp.eq.s32.totalorder %s77, 0
      %s80 = sadd.s32 %s79, 1
      %s81 = scalar_select %p78, %s79, %s80
      %p84 = pneg %p78
      %p85 = scmp.eq.s32.totalorder %s18, 1
      %p86 = por %p84, %p85
      %p87 = scmp.ne.s32.totalorder %s79, %s82
      %p88 = scmp.eq.s32.totalorder %s18, 0
      %p89 = por %p87, %p88
      %p90 = scmp.ne.s32.totalorder %s79, %s82
      %p91 = scmp.eq.s32.totalorder %s23, 1
      %p92 = por %p90, %p91
      %p93 = scmp.ne.s32.totalorder %s82, %s83
      %p94 = scmp.eq.s32.totalorder %s23, 0
      %p95 = por %p93, %p94
      %p96 = scmp.ne.s32.totalorder %s82, %s83
      %p97 = scmp.eq.s32.totalorder %s24, 1
      %p98 = por %p96, %p97
      %p100 = scmp.ne.s32.totalorder %s83, %s99
      %p101 = scmp.eq.s32.totalorder %s24, 0
      %p102 = por %p100, %p101
      %s103 = ssub.s32 %s25, %s44
      %s104 = ssub.s32 %s27, %s36
      %s105 = sor.u32 %s103, %s104
      %p106 = scmp.eq.s32.totalorder %s105, 0
      %s108 = sadd.s32 %s107, 1
      %s109 = scalar_select %p106, %s107, %s108
      %p112 = pneg %p106
      %p113 = scmp.eq.s32.totalorder %s18, 1
      %p114 = por %p112, %p113
      %p115 = scmp.ne.s32.totalorder %s107, %s110
      %p116 = scmp.eq.s32.totalorder %s18, 0
      %p117 = por %p115, %p116
      %p118 = scmp.ne.s32.totalorder %s107, %s110
      %p119 = scmp.eq.s32.totalorder %s23, 1
      %p120 = por %p118, %p119
      %p121 = scmp.ne.s32.totalorder %s110, %s111
      %p122 = scmp.eq.s32.totalorder %s23, 0
      %p123 = por %p121, %p122
      %p124 = scmp.ne.s32.totalorder %s110, %s111
      %p125 = scmp.eq.s32.totalorder %s24, 1
      %p126 = por %p124, %p125
      %p128 = scmp.ne.s32.totalorder %s111, %s127
      %p129 = scmp.eq.s32.totalorder %s24, 0
      %p130 = por %p128, %p129
      %s131 = ssub.s32 %s25, %s44
      %s132 = ssub.s32 %s26, %s40
      %s133 = sor.u32 %s131, %s132
      %p134 = scmp.eq.s32.totalorder %s133, 0
      %s136 = sadd.s32 %s135, 1
      %s137 = scalar_select %p134, %s135, %s136
      %p140 = pneg %p134
      %p141 = scmp.eq.s32.totalorder %s18, 1
      %p142 = por %p140, %p141
      %p143 = scmp.ne.s32.totalorder %s135, %s138
      %p144 = scmp.eq.s32.totalorder %s18, 0
      %p145 = por %p143, %p144
      %p146 = scmp.ne.s32.totalorder %s135, %s138
      %p147 = scmp.eq.s32.totalorder %s23, 1
      %p148 = por %p146, %p147
      %p149 = scmp.ne.s32.totalorder %s138, %s139
      %p150 = scmp.eq.s32.totalorder %s23, 0
      %p151 = por %p149, %p150
      %p152 = scmp.ne.s32.totalorder %s138, %s139
      %p153 = scmp.eq.s32.totalorder %s24, 1
      %p154 = por %p152, %p153
      %p156 = scmp.ne.s32.totalorder %s139, %s155
      %p157 = scmp.eq.s32.totalorder %s24, 0
      %p158 = por %p156, %p157
      %s159 = ssub.s32 %s25, %s44
      %s160 = ssub.s32 %s27, %s36
      %s161 = sor.u32 %s159, %s160
      %p162 = scmp.eq.s32.totalorder %s161, 0
      %s164 = sadd.s32 %s163, 1
      %s165 = scalar_select %p162, %s163, %s164
      %p168 = pneg %p162
      %p169 = scmp.eq.s32.totalorder %s18, 1
      %p170 = por %p168, %p169
      %p171 = scmp.ne.s32.totalorder %s163, %s166
      %p172 = scmp.eq.s32.totalorder %s18, 0
      %p173 = por %p171, %p172
      %p174 = scmp.ne.s32.totalorder %s163, %s166
      %p175 = scmp.eq.s32.totalorder %s23, 1
      %p176 = por %p174, %p175
      %p177 = scmp.ne.s32.totalorder %s166, %s167
      %p178 = scmp.eq.s32.totalorder %s23, 0
      %p179 = por %p177, %p178
      %p180 = scmp.ne.s32.totalorder %s166, %s167
      %p181 = scmp.eq.s32.totalorder %s24, 1
      %p182 = por %p180, %p181
      %p184 = scmp.ne.s32.totalorder %s167, %s183
      %p185 = scmp.eq.s32.totalorder %s24, 0
      %p186 = por %p184, %p185
      %s188 = sadd.s32 %s187, 1
      %p191 = scmp.eq.s32.totalorder %s18, 1
      %p192 = scmp.ne.s32.totalorder %s187, %s189
      %p193 = scmp.eq.s32.totalorder %s18, 0
      %p194 = por %p192, %p193
      %p195 = scmp.ne.s32.totalorder %s187, %s189
      %p196 = scmp.eq.s32.totalorder %s23, 1
      %p197 = por %p195, %p196
      %p198 = scmp.ne.s32.totalorder %s189, %s190
      %p199 = scmp.eq.s32.totalorder %s23, 0
      %p200 = por %p198, %p199
      %p201 = scmp.ne.s32.totalorder %s189, %s190
      %p202 = scmp.eq.s32.totalorder %s24, 1
      %p203 = por %p201, %p202
      %p205 = scmp.ne.s32.totalorder %s190, %s204
      %p206 = scmp.eq.s32.totalorder %s24, 0
      %p207 = por %p205, %p206
      %s209 = sadd.s32 %s208, 1
      %p212 = scmp.eq.s32.totalorder %s18, 1
      %p213 = scmp.ne.s32.totalorder %s208, %s210
      %p214 = scmp.eq.s32.totalorder %s18, 0
      %p215 = por %p213, %p214
      %p216 = scmp.ne.s32.totalorder %s208, %s210
      %p217 = scmp.eq.s32.totalorder %s23, 1
      %p218 = por %p216, %p217
      %p219 = scmp.ne.s32.totalorder %s210, %s211
      %p220 = scmp.eq.s32.totalorder %s23, 0
      %p221 = por %p219, %p220
      %p222 = scmp.ne.s32.totalorder %s210, %s211
      %p223 = scmp.eq.s32.totalorder %s24, 1
      %p224 = por %p222, %p223
      %p226 = scmp.ne.s32.totalorder %s211, %s225
      %p227 = scmp.eq.s32.totalorder %s24, 0
      %p228 = por %p226, %p227
      %s230 = sadd.s32 %s229, 1
      %p233 = scmp.eq.s32.totalorder %s18, 1
      %p234 = scmp.ne.s32.totalorder %s229, %s231
      %p235 = scmp.eq.s32.totalorder %s18, 0
      %p236 = por %p234, %p235
      %p237 = scmp.ne.s32.totalorder %s229, %s231
      %p238 = scmp.eq.s32.totalorder %s23, 1
      %p239 = por %p237, %p238
      %p240 = scmp.ne.s32.totalorder %s231, %s232
      %p241 = scmp.eq.s32.totalorder %s23, 0
      %p242 = por %p240, %p241
      %p243 = scmp.ne.s32.totalorder %s231, %s232
      %p244 = scmp.eq.s32.totalorder %s24, 1
      %p245 = por %p243, %p244
      %p247 = scmp.ne.s32.totalorder %s232, %s246
      %p248 = scmp.eq.s32.totalorder %s24, 0
      %p249 = por %p247, %p248
      %s251 = sadd.s32 %s250, 1
      %p254 = scmp.eq.s32.totalorder %s18, 1
      %p255 = scmp.ne.s32.totalorder %s250, %s252
      %p256 = scmp.eq.s32.totalorder %s18, 0
      %p257 = por %p255, %p256
      %p258 = scmp.ne.s32.totalorder %s250, %s252
      %p259 = scmp.eq.s32.totalorder %s23, 1
      %p260 = por %p258, %p259
      %p261 = scmp.ne.s32.totalorder %s252, %s253
      %p262 = scmp.eq.s32.totalorder %s23, 0
      %p263 = por %p261, %p262
      %p264 = scmp.ne.s32.totalorder %s252, %s253
      %p265 = scmp.eq.s32.totalorder %s24, 1
      %p266 = por %p264, %p265
      %p268 = scmp.ne.s32.totalorder %s253, %s267
      %p269 = scmp.eq.s32.totalorder %s24, 0
      %p270 = por %p268, %p269
      %s271 = ssub.s32 %s25, %s44
      %s272 = ssub.s32 %s26, %s40
      %s273 = sor.u32 %s271, %s272
      %s274 = ssub.s32 %s27, %s36
      %s275 = sor.u32 %s273, %s274
      %p276 = scmp.eq.s32.totalorder %s275, 0
      %s278 = sadd.s32 %s277, 1
      %s279 = scalar_select %p276, %s277, %s278
      %p282 = pneg %p276
      %p283 = scmp.eq.s32.totalorder %s18, 1
      %p284 = por %p282, %p283
      %p285 = scmp.ne.s32.totalorder %s277, %s280
      %p286 = scmp.eq.s32.totalorder %s18, 0
      %p287 = por %p285, %p286
      %p288 = scmp.ne.s32.totalorder %s277, %s280
      %p289 = scmp.eq.s32.totalorder %s23, 1
      %p290 = por %p288, %p289
      %p291 = scmp.ne.s32.totalorder %s280, %s281
      %p292 = scmp.eq.s32.totalorder %s23, 0
      %p293 = por %p291, %p292
      %p294 = scmp.ne.s32.totalorder %s280, %s281
      %p295 = scmp.eq.s32.totalorder %s24, 1
      %p296 = por %p294, %p295
      %p298 = scmp.ne.s32.totalorder %s281, %s297
      %p299 = scmp.eq.s32.totalorder %s24, 0
      %p300 = por %p298, %p299
      %p301 = scmp.le.s32.totalorder 1, %s18
      %p302 = scmp.lt.s32.totalorder %s18, 3
      %p303 = pnand %p301, %p302
      %p304 = pneg %p303
      // Predicated region
      $region9: #{edge_transition_forward.1} parent=5 // pred_check
        _
      $region10: #{edge_transition_forward.1} parent=5 // pred_check_branch
        %306 = sbr.rel (%p303) target = $region12
      $region11: #{edge_transition_forward.1} parent=5 // pred_region
        %s307 = ssub.s32 %s18, 1
        // Predicated region
        $region13: #{edge_transition_forward.1} parent=11 // pred_check
          %p308 = pneg %p200
        $region14: #{edge_transition_forward.1} parent=11 // pred_check_branch
          %310 = sbr.rel (%p308) target = $region16
        $region15: #{edge_transition_forward.1} parent=11 // pred_region
          _
        $region16: #{edge_transition_forward.1} parent=11 // pred_fallthru
          _
        // Predicated region
        $region17: #{edge_transition_forward.1} parent=11 // pred_check
          %p311 = pneg %p221
        $region18: #{edge_transition_forward.1} parent=11 // pred_check_branch
          %313 = sbr.rel (%p311) target = $region20
        $region19: #{edge_transition_forward.1} parent=11 // pred_region
          _
        $region20: #{edge_transition_forward.1} parent=11 // pred_fallthru
          _
        // Predicated region
        $region21: #{edge_transition_forward.1} parent=11 // pred_check
          %p314 = pneg %p242
        $region22: #{edge_transition_forward.1} parent=11 // pred_check_branch
          %316 = sbr.rel (%p314) target = $region24
        $region23: #{edge_transition_forward.1} parent=11 // pred_region
          _
        $region24: #{edge_transition_forward.1} parent=11 // pred_fallthru
          _
        // Predicated region
        $region25: #{edge_transition_forward.1} parent=11 // pred_check
          %p317 = pneg %p263
        $region26: #{edge_transition_forward.1} parent=11 // pred_check_branch
          %319 = sbr.rel (%p317) target = $region28
        $region27: #{edge_transition_forward.1} parent=11 // pred_region
          _
        $region28: #{edge_transition_forward.1} parent=11 // pred_fallthru
          _
      $region12: #{edge_transition_forward.1} parent=5 // pred_fallthru
        _
      %p320 = scmp.lt.s32.totalorder %s18, 2
      // Predicated region
      $region29: #{edge_transition_forward.1} parent=5 // pred_check
        %p321 = pneg %p320
      $region30: #{edge_transition_forward.1} parent=5 // pred_check_branch
        %323 = sbr.rel (%p321) target = $region32
      $region31: #{edge_transition_forward.1} parent=5 // pred_region
        // Predicated region
        $region33: #{edge_transition_forward.1} parent=31 // pred_check
          %p324 = pneg %p61
        $region34: #{edge_transition_forward.1} parent=31 // pred_check_branch
          %326 = sbr.rel (%p324) target = $region36
        $region35: #{edge_transition_forward.1} parent=31 // pred_region
          %s327 = smul.u32 8, %s26
          %p328 = scmp.lt.s32.totalorder %s25, 1
          %s329 = scalar_select %p328, %s25, 1
          %p330 = scmp.lt.s32.totalorder %s327, 7
          %s331 = scalar_select %p330, %s327, 7
          %p332 = scmp.lt.s32.totalorder %s27, 0
          %s333 = scalar_select %p332, %s27, 0
          %s334 = sadd.s32 %s333, %s331
          %s335 = smul.addr %s329, 8
          %s336 = sadd.s32 %s334, %s335
          %s337 = smul.addr %s336, 8
          %s338 = scalar_lea.vmem %s0, %s337
          %s339 = smul.u32 8, %s26
        $region36: #{edge_transition_forward.1} parent=31 // pred_fallthru
          _
        // Predicated region
        $region37: #{edge_transition_forward.1} parent=31 // pred_check
          %p340 = pneg %p89
        $region38: #{edge_transition_forward.1} parent=31 // pred_check_branch
          %342 = sbr.rel (%p340) target = $region40
        $region39: #{edge_transition_forward.1} parent=31 // pred_region
          %p343 = scmp.lt.s32.totalorder %s25, 1
          %s344 = scalar_select %p343, %s25, 1
          %p345 = scmp.lt.s32.totalorder %s26, 0
          %s346 = scalar_select %p345, %s26, 0
          %s347 = sadd.s32 %s346, %s344
          %s348 = smul.addr %s347, 8
          %s349 = scalar_lea.vmem %s1, %s348
        $region40: #{edge_transition_forward.1} parent=31 // pred_fallthru
          _
        // Predicated region
        $region41: #{edge_transition_forward.1} parent=31 // pred_check
          %p350 = pneg %p117
        $region42: #{edge_transition_forward.1} parent=31 // pred_check_branch
          %352 = sbr.rel (%p350) target = $region44
        $region43: #{edge_transition_forward.1} parent=31 // pred_region
          %p353 = scmp.lt.s32.totalorder %s25, 1
          %s354 = scalar_select %p353, %s25, 1
          %p355 = scmp.lt.s32.totalorder %s27, 0
          %s356 = scalar_select %p355, %s27, 0
          %s357 = sadd.s32 %s356, %s354
          %s358 = smul.addr %s357, 8
          %s359 = scalar_lea.vmem %s2, %s358
        $region44: #{edge_transition_forward.1} parent=31 // pred_fallthru
          _
        // Predicated region
        $region45: #{edge_transition_forward.1} parent=31 // pred_check
          %p360 = pneg %p145
        $region46: #{edge_transition_forward.1} parent=31 // pred_check_branch
          %362 = sbr.rel (%p360) target = $region48
        $region47: #{edge_transition_forward.1} parent=31 // pred_region
          %p363 = scmp.lt.s32.totalorder %s25, 1
          %s364 = scalar_select %p363, %s25, 1
          %p365 = scmp.lt.s32.totalorder %s26, 0
          %s366 = scalar_select %p365, %s26, 0
          %s367 = sadd.s32 %s366, %s364
          %s368 = smul.addr %s367, 8
          %s369 = scalar_lea.vmem %s3, %s368
        $region48: #{edge_transition_forward.1} parent=31 // pred_fallthru
          _
        // Predicated region
        $region49: #{edge_transition_forward.1} parent=31 // pred_check
          %p370 = pneg %p173
        $region50: #{edge_transition_forward.1} parent=31 // pred_check_branch
          %372 = sbr.rel (%p370) target = $region52
        $region51: #{edge_transition_forward.1} parent=31 // pred_region
          %p373 = scmp.lt.s32.totalorder %s25, 1
          %s374 = scalar_select %p373, %s25, 1
          %p375 = scmp.lt.s32.totalorder %s27, 0
          %s376 = scalar_select %p375, %s27, 0
          %s377 = sadd.s32 %s376, %s374
          %s378 = smul.addr %s377, 8
          %s379 = scalar_lea.vmem %s4, %s378
        $region52: #{edge_transition_forward.1} parent=31 // pred_fallthru
          _
      $region32: #{edge_transition_forward.1} parent=5 // pred_fallthru
        _
      %p380 = scmp.le.s32.totalorder 1, %s18
      %p381 = scmp.lt.s32.totalorder %s18, 3
      %p382 = pnand %p380, %p381
      %p383 = pneg %p382
      // Predicated region
      $region53: #{edge_transition_forward.1} parent=5 // pred_check
        _
      $region54: #{edge_transition_forward.1} parent=5 // pred_check_branch
        %385 = sbr.rel (%p382) target = $region56
      $region55: #{edge_transition_forward.1} parent=5 // pred_region
        %s386 = ssub.s32 %s18, 1
        %s387 = smul.u32 8, %s29
        %p388 = scmp.lt.s32.totalorder %s28, 1
        %s389 = scalar_select %p388, %s28, 1
        %p390 = scmp.lt.s32.totalorder %s387, 7
        %s391 = scalar_select %p390, %s387, 7
        %p392 = scmp.lt.s32.totalorder %s30, 0
        %s393 = scalar_select %p392, %s30, 0
        %s394 = sadd.s32 %s393, %s391
        %s395 = smul.addr %s389, 8
        %s396 = sadd.s32 %s394, %s395
        %s397 = smul.addr %s396, 8
        %s398 = scalar_lea.vmem %s0, %s397
        %p399 = pneg %p67
        %p400 = pneg %p64
        %p401 = scmp.lt.s32.totalorder %s28, 1
        %s402 = scalar_select %p401, %s28, 1
        %p403 = scmp.lt.s32.totalorder %s29, 0
        %s404 = scalar_select %p403, %s29, 0
        %s405 = sadd.s32 %s404, %s402
        %s406 = smul.addr %s405, 8
        %s407 = scalar_lea.vmem %s1, %s406
        %p408 = pneg %p95
        %p409 = pneg %p92
        %p410 = scmp.lt.s32.totalorder %s28, 1
        %s411 = scalar_select %p410, %s28, 1
        %p412 = scmp.lt.s32.totalorder %s30, 0
        %s413 = scalar_select %p412, %s30, 0
        %s414 = sadd.s32 %s413, %s411
        %s415 = smul.addr %s414, 8
        %s416 = scalar_lea.vmem %s2, %s415
        %p417 = pneg %p123
        %p418 = pneg %p120
        %p419 = scmp.lt.s32.totalorder %s28, 1
        %s420 = scalar_select %p419, %s28, 1
        %p421 = scmp.lt.s32.totalorder %s29, 0
        %s422 = scalar_select %p421, %s29, 0
        %s423 = sadd.s32 %s422, %s420
        %s424 = smul.addr %s423, 8
        %s425 = scalar_lea.vmem %s3, %s424
        %p426 = pneg %p151
        %p427 = pneg %p148
        %p428 = scmp.lt.s32.totalorder %s28, 1
        %s429 = scalar_select %p428, %s28, 1
        %p430 = scmp.lt.s32.totalorder %s30, 0
        %s431 = scalar_select %p430, %s30, 0
        %s432 = sadd.s32 %s431, %s429
        %s433 = smul.addr %s432, 8
        %s434 = scalar_lea.vmem %s4, %s433
        %p435 = pneg %p179
        %p436 = pneg %p176
        %p437 = pneg %p200
        %p438 = pneg %p197
        %p439 = pneg %p221
        %p440 = pneg %p218
        %p441 = pneg %p242
        %p442 = pneg %p239
        %p443 = pneg %p263
        %p444 = pneg %p260
        %p445 = pneg %p293
        %p446 = pneg %p290
        %s447 = sand.u32 %s280, 1
        %s448 = scalar_lea.sflag [#allocation3], %s447
        %s449 = sand.u32 %s280, 1
        %s450 = smul.addr %s449, 64
        %s451 = scalar_lea.vmem [#allocation2], %s450
        %s452 = smul.u32 8, %s29
        %p453 = scmp.lt.s32.totalorder %s28, 1
        %s454 = scalar_select %p453, %s28, 1
        %p455 = scmp.lt.s32.totalorder %s452, 7
        %s456 = scalar_select %p455, %s452, 7
        %p457 = scmp.lt.s32.totalorder %s30, 0
        %s458 = scalar_select %p457, %s30, 0
        %s459 = sadd.s32 %s458, %s456
        %s460 = smul.addr %s454, 8
        %s461 = sadd.s32 %s459, %s460
        %s462 = smul.addr %s461, 8
        %s463 = scalar_lea.vmem %s0, %s462
        %s464 = smul.u32 8, %s29
        %p465 = scmp.lt.s32.totalorder %s28, 1
        %s466 = scalar_select %p465, %s28, 1
        %p467 = scmp.lt.s32.totalorder %s29, 0
        %s468 = scalar_select %p467, %s29, 0
        %s469 = sadd.s32 %s468, %s466
        %s470 = smul.addr %s469, 8
        %s471 = scalar_lea.vmem %s1, %s470
        %p472 = scmp.lt.s32.totalorder %s28, 1
        %s473 = scalar_select %p472, %s28, 1
        %p474 = scmp.lt.s32.totalorder %s30, 0
        %s475 = scalar_select %p474, %s30, 0
        %s476 = sadd.s32 %s475, %s473
        %s477 = smul.addr %s476, 8
        %s478 = scalar_lea.vmem %s2, %s477
        %p479 = scmp.lt.s32.totalorder %s28, 1
        %s480 = scalar_select %p479, %s28, 1
        %p481 = scmp.lt.s32.totalorder %s29, 0
        %s482 = scalar_select %p481, %s29, 0
        %s483 = sadd.s32 %s482, %s480
        %s484 = smul.addr %s483, 8
        %s485 = scalar_lea.vmem %s3, %s484
        %p486 = scmp.lt.s32.totalorder %s28, 1
        %s487 = scalar_select %p486, %s28, 1
        %p488 = scmp.lt.s32.totalorder %s30, 0
        %s489 = scalar_select %p488, %s30, 0
        %s490 = sadd.s32 %s489, %s487
        %s491 = smul.addr %s490, 8
        %s492 = scalar_lea.vmem %s4, %s491
        %s493 = smul.u32 8, %s29
        %v494 = vld [vmem:[%s463] sm:$0xff]
        %v495 = vld [vmem:[%s463 + $0x8] sm:$0xff]
        %v496 = vld [vmem:[%s463 + $0x10] sm:$0xff]
        %v497 = vld [vmem:[%s463 + $0x18] sm:$0xff]
        %v498 = vld [vmem:[%s463 + $0x20] sm:$0xff]
        %v499 = vld [vmem:[%s463 + $0x28] sm:$0xff]
        %v500 = vld [vmem:[%s463 + $0x30] sm:$0xff]
        %v501 = vld [vmem:[%s463 + $0x38] sm:$0xff]
        %v502 = vld [vmem:[%s5] sm:$0xff]
        %vm503 = vcmask 64512
        %v505 = vsel %vm503, %v494, 0
        %v508 = vsel %vm503, %v495, 0
        %v511 = vsel %vm503, %v496, 0
        %v514 = vsel %vm503, %v497, 0
        %v517 = vsel %vm503, %v498, 0
        %v520 = vsel %vm503, %v499, 0
        %v523 = vsel %vm503, %v500, 0
        %v526 = vsel %vm503, %v501, 0
        %528 = vmatprep.subr.mxu0 0.0
        %529 = vmatpush1.msra.mxu0 0.0
        %530 = vmatprep.subr.mxu0 0.0
        %531 = vmatpush1.msra.mxu0 0.0
        %532 = vmatprep.subr.mxu0 0.0
        %533 = vmatpush1.msra.mxu0 0.0
        %534 = vmatprep.subr.mxu0 0.0
        %535 = vmatpush1.msra.mxu0 0.0
        %536 = vmatprep.subr.mxu0 0.0
        %537 = vmatpush1.msra.mxu0 0.0
        %538 = vmatprep.subr.mxu0 0.0
        %539 = vmatpush1.msra.mxu0 0.0
        %540 = vmatprep.subr.mxu0 0.0
        %541 = vmatpush1.msra.mxu0 0.0
        %542 = vmatprep.subr.mxu0 0.0
        %543 = vmatpush1.msra.mxu0 0.0
        %544 = vmatprep.subr.mxu0 0.0
        %545 = vmatpush1.msra.mxu0 0.0
        %546 = vmatprep.subr.mxu0 0.0
        %547 = vmatpush1.msra.mxu0 0.0
        %548 = vmatprep.subr.mxu0 0.0
        %549 = vmatpush1.msra.mxu0 0.0
        %550 = vmatprep.subr.mxu0 0.0
        %551 = vmatpush1.msra.mxu0 0.0
        %552 = vmatprep.subr.mxu0 0.0
        %553 = vmatpush1.msra.mxu0 0.0
        %554 = vmatprep.subr.mxu0 0.0
        %555 = vmatpush1.msra.mxu0 0.0
        %556 = vmatprep.subr.mxu0 0.0
        %557 = vmatpush1.msra.mxu0 0.0
        %558 = vmatprep.subr.mxu0 0.0
        %559 = vmatpush1.msra.mxu0 %v502
        %560 = vmatprep.subr.mxu0 0.0
        %561 = vmatpush2.msra.mxu0 0.0
        %562 = vmatprep.subr.mxu0 0.0
        %563 = vmatpush2.msra.mxu0 0.0
        %564 = vmatprep.subr.mxu0 0.0
        %565 = vmatpush2.msra.mxu0 0.0
        %566 = vmatprep.subr.mxu0 0.0
        %567 = vmatpush2.msra.mxu0 0.0
        %568 = vmatprep.subr.mxu0 0.0
        %569 = vmatpush2.msra.mxu0 0.0
        %570 = vmatprep.subr.mxu0 0.0
        %571 = vmatpush2.msra.mxu0 0.0
        %572 = vmatprep.subr.mxu0 0.0
        %573 = vmatpush2.msra.mxu0 0.0
        %574 = vmatprep.subr.mxu0 0.0
        %575 = vmatpush2.msra.mxu0 0.0
        %576 = vmatprep.subr.mxu0 0.0
        %577 = vmatpush2.msra.mxu0 0.0
        %578 = vmatprep.subr.mxu0 0.0
        %579 = vmatpush2.msra.mxu0 0.0
        %580 = vmatprep.subr.mxu0 0.0
        %581 = vmatpush2.msra.mxu0 0.0
        %582 = vmatprep.subr.mxu0 0.0
        %583 = vmatpush2.msra.mxu0 0.0
        %584 = vmatprep.subr.mxu0 0.0
        %585 = vmatpush2.msra.mxu0 0.0
        %586 = vmatprep.subr.mxu0 0.0
        %587 = vmatpush2.msra.mxu0 0.0
        %588 = vmatprep.subr.mxu0 0.0
        %589 = vmatpush2.msra.mxu0 0.0
        %590 = vmatprep.subr.mxu0 0.0
        %591 = vmatpush2.msra.mxu0 0.0
        %592 = vmatprep.mubr.f32.mxu0 0.0
        %593 = vmatmul.mubr.f32.gmra.mxu0 %v505
        %v594 = vpop.f32.mrf.mxu0
        %v595 = vadd.f32 0.0, %v594
        %v596 = vpop.f32.mrf.mxu0
        %597 = vmatprep.mubr.f32.mxu0 0.0
        %598 = vmatmul.mubr.f32.gmra.mxu0 %v508
        %v599 = vpop.f32.mrf.mxu0
        %v600 = vadd.f32 0.0, %v599
        %v601 = vpop.f32.mrf.mxu0
        %602 = vmatprep.mubr.f32.mxu0 0.0
        %603 = vmatmul.mubr.f32.gmra.mxu0 %v511
        %v604 = vpop.f32.mrf.mxu0
        %v605 = vadd.f32 0.0, %v604
        %v606 = vpop.f32.mrf.mxu0
        %607 = vmatprep.mubr.f32.mxu0 0.0
        %608 = vmatmul.mubr.f32.gmra.mxu0 %v514
        %v609 = vpop.f32.mrf.mxu0
        %v610 = vadd.f32 0.0, %v609
        %v611 = vpop.f32.mrf.mxu0
        %612 = vmatprep.mubr.f32.mxu0 0.0
        %613 = vmatmul.mubr.f32.gmra.mxu0 %v517
        %v614 = vpop.f32.mrf.mxu0
        %v615 = vadd.f32 0.0, %v614
        %v616 = vpop.f32.mrf.mxu0
        %617 = vmatprep.mubr.f32.mxu0 0.0
        %618 = vmatmul.mubr.f32.gmra.mxu0 %v520
        %v619 = vpop.f32.mrf.mxu0
        %v620 = vadd.f32 0.0, %v619
        %v621 = vpop.f32.mrf.mxu0
        %622 = vmatprep.mubr.f32.mxu0 0.0
        %623 = vmatmul.mubr.f32.gmra.mxu0 %v523
        %v624 = vpop.f32.mrf.mxu0
        %v625 = vadd.f32 0.0, %v624
        %v626 = vpop.f32.mrf.mxu0
        %627 = vmatprep.mubr.f32.mxu0 0.0
        %628 = vmatmul.mubr.f32.gmra.mxu0 %v526
        %v629 = vpop.f32.mrf.mxu0
        %v630 = vadd.f32 0.0, %v629
        %v631 = vpop.f32.mrf.mxu0
        %632 = vdwg.mxu0
        %v633 = vld [vmem:[%s471] sm:$0xff]
        %v635 = vcombine.high %v633, %v633
        %v637 = vunpack.c.l.s4 1966171168
        %v638 = vunpack.c.0.s8 %v637
        %v639 = vlaneseq
        %v640 = vshrl.u32 %v639, 7
        %v641 = vsub.s32 %v638, %v640
        %v642 = vrot.slane %v633, %v641
        %v644 = vunpack.c.l.s4 1966171168
        %v645 = vunpack.c.0.s8 %v644
        %v646 = vlaneseq
        %v647 = vshrl.u32 %v646, 7
        %v648 = vsub.s32 %v645, %v647
        %v649 = vrot.slane %v635, %v648
        %v650 = vcombine.high %v642, %v642
        %v651 = vcombine.high %v649, %v649
        %v653 = vunpack.c.l.s4 1966171168
        %v654 = vunpack.c.0.s8 %v653
        %v655 = vlaneseq
        %v656 = vshrl.u32 %v655, 7
        %v657 = vsub.s32 %v654, %v656
        %v658 = vrot.slane %v642, %v657
        %v660 = vunpack.c.l.s4 1966171168
        %v661 = vunpack.c.0.s8 %v660
        %v662 = vlaneseq
        %v663 = vshrl.u32 %v662, 7
        %v664 = vsub.s32 %v661, %v663
        %v665 = vrot.slane %v649, %v664
        %v667 = vunpack.c.l.s4 1966171168
        %v668 = vunpack.c.0.s8 %v667
        %v669 = vlaneseq
        %v670 = vshrl.u32 %v669, 7
        %v671 = vsub.s32 %v668, %v670
        %v672 = vrot.slane %v650, %v671
        %v674 = vunpack.c.l.s4 1966171168
        %v675 = vunpack.c.0.s8 %v674
        %v676 = vlaneseq
        %v677 = vshrl.u32 %v676, 7
        %v678 = vsub.s32 %v675, %v677
        %v679 = vrot.slane %v651, %v678
        %v680 = vcombine.high %v658, %v658
        %v681 = vcombine.high %v665, %v665
        %v682 = vcombine.high %v672, %v672
        %v683 = vcombine.high %v679, %v679
        %v684 = vlaneseq
        %v685 = vshrl.u32 %v684, 7
        %v686 = vsub.s32 0, %v685
        %v687 = vrot.slane %v658, %v686
        %v688 = vlaneseq
        %v689 = vshrl.u32 %v688, 7
        %v690 = vsub.s32 0, %v689
        %v691 = vrot.slane %v672, %v690
        %v692 = vlaneseq
        %v693 = vshrl.u32 %v692, 7
        %v694 = vsub.s32 0, %v693
        %v695 = vrot.slane %v680, %v694
        %v696 = vlaneseq
        %v697 = vshrl.u32 %v696, 7
        %v698 = vsub.s32 0, %v697
        %v699 = vrot.slane %v682, %v698
        %v700 = vlaneseq
        %v701 = vshrl.u32 %v700, 7
        %v702 = vsub.s32 0, %v701
        %v703 = vrot.slane %v665, %v702
        %v704 = vlaneseq
        %v705 = vshrl.u32 %v704, 7
        %v706 = vsub.s32 0, %v705
        %v707 = vrot.slane %v679, %v706
        %v708 = vlaneseq
        %v709 = vshrl.u32 %v708, 7
        %v710 = vsub.s32 0, %v709
        %v711 = vrot.slane %v681, %v710
        %v712 = vlaneseq
        %v713 = vshrl.u32 %v712, 7
        %v714 = vsub.s32 0, %v713
        %v715 = vrot.slane %v683, %v714
        %v724 = vadd.f32 %v595, %v687
        %v725 = vadd.f32 %v600, %v691
        %v726 = vadd.f32 %v605, %v695
        %v727 = vadd.f32 %v610, %v699
        %v728 = vadd.f32 %v615, %v703
        %v729 = vadd.f32 %v620, %v707
        %v730 = vadd.f32 %v625, %v711
        %v731 = vadd.f32 %v630, %v715
        %v732 = vld [vmem:[%s478] sm:$0xff]
        %v733 = vadd.f32 %v724, %v732
        %v734 = vadd.f32 %v725, %v732
        %v735 = vadd.f32 %v726, %v732
        %v736 = vadd.f32 %v727, %v732
        %v737 = vadd.f32 %v728, %v732
        %v738 = vadd.f32 %v729, %v732
        %v739 = vadd.f32 %v730, %v732
        %v740 = vadd.f32 %v731, %v732
        %v741 = vmax.f32 %v733, 0.0
        %v742 = vmax.f32 %v734, 0.0
        %v743 = vmax.f32 %v735, 0.0
        %v744 = vmax.f32 %v736, 0.0
        %v745 = vmax.f32 %v737, 0.0
        %v746 = vmax.f32 %v738, 0.0
        %v747 = vmax.f32 %v739, 0.0
        %v748 = vmax.f32 %v740, 0.0
        %v749 = vld [vmem:[%s5 + $0x8] sm:$0xff]
        %v750 = vld [vmem:[%s5 + $0x10] sm:$0xff]
        %v751 = vld [vmem:[%s5 + $0x18] sm:$0xff]
        %v752 = vld [vmem:[%s5 + $0x20] sm:$0xff]
        %v753 = vld [vmem:[%s5 + $0x28] sm:$0xff]
        %v754 = vld [vmem:[%s5 + $0x30] sm:$0xff]
        %v755 = vld [vmem:[%s5 + $0x38] sm:$0xff]
        %v756 = vld [vmem:[%s5 + $0x40] sm:$0xff]
        %v757 = vld [vmem:[%s5 + $0x48] sm:$0xff]
        %v758 = vld [vmem:[%s5 + $0x50] sm:$0xff]
        %v759 = vld [vmem:[%s5 + $0x58] sm:$0xff]
        %v760 = vld [vmem:[%s5 + $0x60] sm:$0xff]
        %v761 = vld [vmem:[%s5 + $0x68] sm:$0xff]
        %v762 = vld [vmem:[%s5 + $0x70] sm:$0xff]
        %v763 = vld [vmem:[%s5 + $0x78] sm:$0xff]
        %v764 = vld [vmem:[%s5 + $0x80] sm:$0xff]
        %v765 = vld [vmem:[%s7] sm:$0x1]
        %v767 = vlaneseq
        %v768 = vshrl.u32 %v767, 7
        %v769 = vsub.s32 0, %v768
        %v770 = vrot.slane %v765, %v769
        %772 = vmatprep.subr.mxu0 0.0
        %773 = vmatpush1.msra.mxu0 %v764
        %774 = vmatprep.subr.mxu0 0.0
        %775 = vmatpush1.msra.mxu0 %v763
        %776 = vmatprep.subr.mxu0 0.0
        %777 = vmatpush1.msra.mxu0 %v762
        %778 = vmatprep.subr.mxu0 0.0
        %779 = vmatpush1.msra.mxu0 %v761
        %780 = vmatprep.subr.mxu0 0.0
        %781 = vmatpush1.msra.mxu0 %v760
        %782 = vmatprep.subr.mxu0 0.0
        %783 = vmatpush1.msra.mxu0 %v759
        %784 = vmatprep.subr.mxu0 0.0
        %785 = vmatpush1.msra.mxu0 %v758
        %786 = vmatprep.subr.mxu0 0.0
        %787 = vmatpush1.msra.mxu0 %v757
        %788 = vmatprep.subr.mxu0 0.0
        %789 = vmatpush1.msra.mxu0 %v756
        %790 = vmatprep.subr.mxu0 0.0
        %791 = vmatpush1.msra.mxu0 %v755
        %792 = vmatprep.subr.mxu0 0.0
        %793 = vmatpush1.msra.mxu0 %v754
        %794 = vmatprep.subr.mxu0 0.0
        %795 = vmatpush1.msra.mxu0 %v753
        %796 = vmatprep.subr.mxu0 0.0
        %797 = vmatpush1.msra.mxu0 %v752
        %798 = vmatprep.subr.mxu0 0.0
        %799 = vmatpush1.msra.mxu0 %v751
        %800 = vmatprep.subr.mxu0 0.0
        %801 = vmatpush1.msra.mxu0 %v750
        %802 = vmatprep.subr.mxu0 0.0
        %803 = vmatpush1.msra.mxu0 %v749
        %804 = vmatprep.subr.mxu0 0.0
        %805 = vmatpush2.msra.mxu0 0.0
        %806 = vmatprep.subr.mxu0 0.0
        %807 = vmatpush2.msra.mxu0 0.0
        %808 = vmatprep.subr.mxu0 0.0
        %809 = vmatpush2.msra.mxu0 0.0
        %810 = vmatprep.subr.mxu0 0.0
        %811 = vmatpush2.msra.mxu0 0.0
        %812 = vmatprep.subr.mxu0 0.0
        %813 = vmatpush2.msra.mxu0 0.0
        %814 = vmatprep.subr.mxu0 0.0
        %815 = vmatpush2.msra.mxu0 0.0
        %816 = vmatprep.subr.mxu0 0.0
        %817 = vmatpush2.msra.mxu0 0.0
        %818 = vmatprep.subr.mxu0 0.0
        %819 = vmatpush2.msra.mxu0 0.0
        %820 = vmatprep.subr.mxu0 0.0
        %821 = vmatpush2.msra.mxu0 0.0
        %822 = vmatprep.subr.mxu0 0.0
        %823 = vmatpush2.msra.mxu0 0.0
        %824 = vmatprep.subr.mxu0 0.0
        %825 = vmatpush2.msra.mxu0 0.0
        %826 = vmatprep.subr.mxu0 0.0
        %827 = vmatpush2.msra.mxu0 0.0
        %828 = vmatprep.subr.mxu0 0.0
        %829 = vmatpush2.msra.mxu0 0.0
        %830 = vmatprep.subr.mxu0 0.0
        %831 = vmatpush2.msra.mxu0 0.0
        %832 = vmatprep.subr.mxu0 0.0
        %833 = vmatpush2.msra.mxu0 0.0
        %834 = vmatprep.subr.mxu0 0.0
        %835 = vmatpush2.msra.mxu0 0.0
        %836 = vmatprep.mubr.f32.mxu0 0.0
        %837 = vmatmul.mubr.f32.gmra.mxu0 %v741
        %v838 = vpop.f32.mrf.mxu0
        %v839 = vadd.f32 %v770, %v838
        %v840 = vpop.f32.mrf.mxu0
        %841 = vmatprep.mubr.f32.mxu0 0.0
        %842 = vmatmul.mubr.f32.gmra.mxu0 %v742
        %v843 = vpop.f32.mrf.mxu0
        %v844 = vadd.f32 %v770, %v843
        %v845 = vpop.f32.mrf.mxu0
        %846 = vmatprep.mubr.f32.mxu0 0.0
        %847 = vmatmul.mubr.f32.gmra.mxu0 %v743
        %v848 = vpop.f32.mrf.mxu0
        %v849 = vadd.f32 %v770, %v848
        %v850 = vpop.f32.mrf.mxu0
        %851 = vmatprep.mubr.f32.mxu0 0.0
        %852 = vmatmul.mubr.f32.gmra.mxu0 %v744
        %v853 = vpop.f32.mrf.mxu0
        %v854 = vadd.f32 %v770, %v853
        %v855 = vpop.f32.mrf.mxu0
        %856 = vmatprep.mubr.f32.mxu0 0.0
        %857 = vmatmul.mubr.f32.gmra.mxu0 %v745
        %v858 = vpop.f32.mrf.mxu0
        %v859 = vadd.f32 %v770, %v858
        %v860 = vpop.f32.mrf.mxu0
        %861 = vmatprep.mubr.f32.mxu0 0.0
        %862 = vmatmul.mubr.f32.gmra.mxu0 %v746
        %v863 = vpop.f32.mrf.mxu0
        %v864 = vadd.f32 %v770, %v863
        %v865 = vpop.f32.mrf.mxu0
        %866 = vmatprep.mubr.f32.mxu0 0.0
        %867 = vmatmul.mubr.f32.gmra.mxu0 %v747
        %v868 = vpop.f32.mrf.mxu0
        %v869 = vadd.f32 %v770, %v868
        %v870 = vpop.f32.mrf.mxu0
        %871 = vmatprep.mubr.f32.mxu0 0.0
        %872 = vmatmul.mubr.f32.gmra.mxu0 %v748
        %v873 = vpop.f32.mrf.mxu0
        %v874 = vadd.f32 %v770, %v873
        %v875 = vpop.f32.mrf.mxu0
        %876 = vdwg.mxu0
        %v877 = vmax.f32 %v839, 0.0
        %v878 = vmax.f32 %v844, 0.0
        %v879 = vmax.f32 %v849, 0.0
        %v880 = vmax.f32 %v854, 0.0
        %v881 = vmax.f32 %v859, 0.0
        %v882 = vmax.f32 %v864, 0.0
        %v883 = vmax.f32 %v869, 0.0
        %v884 = vmax.f32 %v874, 0.0
        %v885 = vld [vmem:[%s6] sm:$0xff]
        %v886 = vld [vmem:[%s6 + $0x8] sm:$0xff]
        %v887 = vld [vmem:[%s6 + $0x10] sm:$0xff]
        %v888 = vld [vmem:[%s6 + $0x18] sm:$0xff]
        %v889 = vld [vmem:[%s6 + $0x20] sm:$0xff]
        %v890 = vld [vmem:[%s6 + $0x28] sm:$0xff]
        %v891 = vld [vmem:[%s6 + $0x30] sm:$0xff]
        %v892 = vld [vmem:[%s6 + $0x38] sm:$0xff]
        %v893 = vld [vmem:[%s6 + $0x40] sm:$0xff]
        %v894 = vld [vmem:[%s6 + $0x48] sm:$0xff]
        %v895 = vld [vmem:[%s6 + $0x50] sm:$0xff]
        %v896 = vld [vmem:[%s6 + $0x58] sm:$0xff]
        %v897 = vld [vmem:[%s6 + $0x60] sm:$0xff]
        %v898 = vld [vmem:[%s6 + $0x68] sm:$0xff]
        %v899 = vld [vmem:[%s6 + $0x70] sm:$0xff]
        %v900 = vld [vmem:[%s6 + $0x78] sm:$0xff]
        %v901 = vld [vmem:[%s6 + $0x80] sm:$0xff]
        %902 = vmatprep.subr.mxu0 0.0
        %903 = vmatpush1.msra.mxu0 0.0
        %904 = vmatprep.subr.mxu0 0.0
        %905 = vmatpush1.msra.mxu0 0.0
        %906 = vmatprep.subr.mxu0 0.0
        %907 = vmatpush1.msra.mxu0 0.0
        %908 = vmatprep.subr.mxu0 0.0
        %909 = vmatpush1.msra.mxu0 0.0
        %910 = vmatprep.subr.mxu0 0.0
        %911 = vmatpush1.msra.mxu0 0.0
        %912 = vmatprep.subr.mxu0 0.0
        %913 = vmatpush1.msra.mxu0 0.0
        %914 = vmatprep.subr.mxu0 0.0
        %915 = vmatpush1.msra.mxu0 0.0
        %916 = vmatprep.subr.mxu0 0.0
        %917 = vmatpush1.msra.mxu0 0.0
        %918 = vmatprep.subr.mxu0 0.0
        %919 = vmatpush1.msra.mxu0 0.0
        %920 = vmatprep.subr.mxu0 0.0
        %921 = vmatpush1.msra.mxu0 0.0
        %922 = vmatprep.subr.mxu0 0.0
        %923 = vmatpush1.msra.mxu0 0.0
        %924 = vmatprep.subr.mxu0 0.0
        %925 = vmatpush1.msra.mxu0 0.0
        %926 = vmatprep.subr.mxu0 0.0
        %927 = vmatpush1.msra.mxu0 0.0
        %928 = vmatprep.subr.mxu0 0.0
        %929 = vmatpush1.msra.mxu0 0.0
        %930 = vmatprep.subr.mxu0 0.0
        %931 = vmatpush1.msra.mxu0 0.0
        %932 = vmatprep.subr.mxu0 0.0
        %933 = vmatpush1.msra.mxu0 %v901
        %934 = vmatprep.subr.mxu0 0.0
        %935 = vmatpush2.msra.mxu0 0.0
        %936 = vmatprep.subr.mxu0 0.0
        %937 = vmatpush2.msra.mxu0 0.0
        %938 = vmatprep.subr.mxu0 0.0
        %939 = vmatpush2.msra.mxu0 0.0
        %940 = vmatprep.subr.mxu0 0.0
        %941 = vmatpush2.msra.mxu0 0.0
        %942 = vmatprep.subr.mxu0 0.0
        %943 = vmatpush2.msra.mxu0 0.0
        %944 = vmatprep.subr.mxu0 0.0
        %945 = vmatpush2.msra.mxu0 0.0
        %946 = vmatprep.subr.mxu0 0.0
        %947 = vmatpush2.msra.mxu0 0.0
        %948 = vmatprep.subr.mxu0 0.0
        %949 = vmatpush2.msra.mxu0 0.0
        %950 = vmatprep.subr.mxu0 0.0
        %951 = vmatpush2.msra.mxu0 0.0
        %952 = vmatprep.subr.mxu0 0.0
        %953 = vmatpush2.msra.mxu0 0.0
        %954 = vmatprep.subr.mxu0 0.0
        %955 = vmatpush2.msra.mxu0 0.0
        %956 = vmatprep.subr.mxu0 0.0
        %957 = vmatpush2.msra.mxu0 0.0
        %958 = vmatprep.subr.mxu0 0.0
        %959 = vmatpush2.msra.mxu0 0.0
        %960 = vmatprep.subr.mxu0 0.0
        %961 = vmatpush2.msra.mxu0 0.0
        %962 = vmatprep.subr.mxu0 0.0
        %963 = vmatpush2.msra.mxu0 0.0
        %964 = vmatprep.subr.mxu0 0.0
        %965 = vmatpush2.msra.mxu0 0.0
        %966 = vmatprep.mubr.f32.mxu0 0.0
        %967 = vmatmul.mubr.f32.gmra.mxu0 %v505
        %v968 = vpop.f32.mrf.mxu0
        %v969 = vadd.f32 0.0, %v968
        %v970 = vpop.f32.mrf.mxu0
        %971 = vmatprep.mubr.f32.mxu0 0.0
        %972 = vmatmul.mubr.f32.gmra.mxu0 %v508
        %v973 = vpop.f32.mrf.mxu0
        %v974 = vadd.f32 0.0, %v973
        %v975 = vpop.f32.mrf.mxu0
        %976 = vmatprep.mubr.f32.mxu0 0.0
        %977 = vmatmul.mubr.f32.gmra.mxu0 %v511
        %v978 = vpop.f32.mrf.mxu0
        %v979 = vadd.f32 0.0, %v978
        %v980 = vpop.f32.mrf.mxu0
        %981 = vmatprep.mubr.f32.mxu0 0.0
        %982 = vmatmul.mubr.f32.gmra.mxu0 %v514
        %v983 = vpop.f32.mrf.mxu0
        %v984 = vadd.f32 0.0, %v983
        %v985 = vpop.f32.mrf.mxu0
        %986 = vmatprep.mubr.f32.mxu0 0.0
        %987 = vmatmul.mubr.f32.gmra.mxu0 %v517
        %v988 = vpop.f32.mrf.mxu0
        %v989 = vadd.f32 0.0, %v988
        %v990 = vpop.f32.mrf.mxu0
        %991 = vmatprep.mubr.f32.mxu0 0.0
        %992 = vmatmul.mubr.f32.gmra.mxu0 %v520
        %v993 = vpop.f32.mrf.mxu0
        %v994 = vadd.f32 0.0, %v993
        %v995 = vpop.f32.mrf.mxu0
        %996 = vmatprep.mubr.f32.mxu0 0.0
        %997 = vmatmul.mubr.f32.gmra.mxu0 %v523
        %v998 = vpop.f32.mrf.mxu0
        %v999 = vadd.f32 0.0, %v998
        %v1000 = vpop.f32.mrf.mxu0
        %1001 = vmatprep.mubr.f32.mxu0 0.0
        %1002 = vmatmul.mubr.f32.gmra.mxu0 %v526
        %v1003 = vpop.f32.mrf.mxu0
        %v1004 = vadd.f32 0.0, %v1003
        %v1005 = vpop.f32.mrf.mxu0
        %1006 = vdwg.mxu0
        %1007 = vmatprep.subr.mxu0 0.0
        %1008 = vmatpush1.msra.mxu0 %v900
        %1009 = vmatprep.subr.mxu0 0.0
        %1010 = vmatpush1.msra.mxu0 %v899
        %1011 = vmatprep.subr.mxu0 0.0
        %1012 = vmatpush1.msra.mxu0 %v898
        %1013 = vmatprep.subr.mxu0 0.0
        %1014 = vmatpush1.msra.mxu0 %v897
        %1015 = vmatprep.subr.mxu0 0.0
        %1016 = vmatpush1.msra.mxu0 %v896
        %1017 = vmatprep.subr.mxu0 0.0
        %1018 = vmatpush1.msra.mxu0 %v895
        %1019 = vmatprep.subr.mxu0 0.0
        %1020 = vmatpush1.msra.mxu0 %v894
        %1021 = vmatprep.subr.mxu0 0.0
        %1022 = vmatpush1.msra.mxu0 %v893
        %1023 = vmatprep.subr.mxu0 0.0
        %1024 = vmatpush1.msra.mxu0 %v892
        %1025 = vmatprep.subr.mxu0 0.0
        %1026 = vmatpush1.msra.mxu0 %v891
        %1027 = vmatprep.subr.mxu0 0.0
        %1028 = vmatpush1.msra.mxu0 %v890
        %1029 = vmatprep.subr.mxu0 0.0
        %1030 = vmatpush1.msra.mxu0 %v889
        %1031 = vmatprep.subr.mxu0 0.0
        %1032 = vmatpush1.msra.mxu0 %v888
        %1033 = vmatprep.subr.mxu0 0.0
        %1034 = vmatpush1.msra.mxu0 %v887
        %1035 = vmatprep.subr.mxu0 0.0
        %1036 = vmatpush1.msra.mxu0 %v886
        %1037 = vmatprep.subr.mxu0 0.0
        %1038 = vmatpush1.msra.mxu0 %v885
        %1039 = vmatprep.subr.mxu0 0.0
        %1040 = vmatpush2.msra.mxu0 0.0
        %1041 = vmatprep.subr.mxu0 0.0
        %1042 = vmatpush2.msra.mxu0 0.0
        %1043 = vmatprep.subr.mxu0 0.0
        %1044 = vmatpush2.msra.mxu0 0.0
        %1045 = vmatprep.subr.mxu0 0.0
        %1046 = vmatpush2.msra.mxu0 0.0
        %1047 = vmatprep.subr.mxu0 0.0
        %1048 = vmatpush2.msra.mxu0 0.0
        %1049 = vmatprep.subr.mxu0 0.0
        %1050 = vmatpush2.msra.mxu0 0.0
        %1051 = vmatprep.subr.mxu0 0.0
        %1052 = vmatpush2.msra.mxu0 0.0
        %1053 = vmatprep.subr.mxu0 0.0
        %1054 = vmatpush2.msra.mxu0 0.0
        %1055 = vmatprep.subr.mxu0 0.0
        %1056 = vmatpush2.msra.mxu0 0.0
        %1057 = vmatprep.subr.mxu0 0.0
        %1058 = vmatpush2.msra.mxu0 0.0
        %1059 = vmatprep.subr.mxu0 0.0
        %1060 = vmatpush2.msra.mxu0 0.0
        %1061 = vmatprep.subr.mxu0 0.0
        %1062 = vmatpush2.msra.mxu0 0.0
        %1063 = vmatprep.subr.mxu0 0.0
        %1064 = vmatpush2.msra.mxu0 0.0
        %1065 = vmatprep.subr.mxu0 0.0
        %1066 = vmatpush2.msra.mxu0 0.0
        %1067 = vmatprep.subr.mxu0 0.0
        %1068 = vmatpush2.msra.mxu0 0.0
        %1069 = vmatprep.subr.mxu0 0.0
        %1070 = vmatpush2.msra.mxu0 0.0
        %1071 = vmatprep.mubr.f32.mxu0 0.0
        %1072 = vmatmul.mubr.f32.gmra.mxu0 %v877
        %v1073 = vpop.f32.mrf.mxu0
        %v1074 = vadd.f32 %v969, %v1073
        %v1075 = vpop.f32.mrf.mxu0
        %1076 = vmatprep.mubr.f32.mxu0 0.0
        %1077 = vmatmul.mubr.f32.gmra.mxu0 %v878
        %v1078 = vpop.f32.mrf.mxu0
        %v1079 = vadd.f32 %v974, %v1078
        %v1080 = vpop.f32.mrf.mxu0
        %1081 = vmatprep.mubr.f32.mxu0 0.0
        %1082 = vmatmul.mubr.f32.gmra.mxu0 %v879
        %v1083 = vpop.f32.mrf.mxu0
        %v1084 = vadd.f32 %v979, %v1083
        %v1085 = vpop.f32.mrf.mxu0
        %1086 = vmatprep.mubr.f32.mxu0 0.0
        %1087 = vmatmul.mubr.f32.gmra.mxu0 %v880
        %v1088 = vpop.f32.mrf.mxu0
        %v1089 = vadd.f32 %v984, %v1088
        %v1090 = vpop.f32.mrf.mxu0
        %1091 = vmatprep.mubr.f32.mxu0 0.0
        %1092 = vmatmul.mubr.f32.gmra.mxu0 %v881
        %v1093 = vpop.f32.mrf.mxu0
        %v1094 = vadd.f32 %v989, %v1093
        %v1095 = vpop.f32.mrf.mxu0
        %1096 = vmatprep.mubr.f32.mxu0 0.0
        %1097 = vmatmul.mubr.f32.gmra.mxu0 %v882
        %v1098 = vpop.f32.mrf.mxu0
        %v1099 = vadd.f32 %v994, %v1098
        %v1100 = vpop.f32.mrf.mxu0
        %1101 = vmatprep.mubr.f32.mxu0 0.0
        %1102 = vmatmul.mubr.f32.gmra.mxu0 %v883
        %v1103 = vpop.f32.mrf.mxu0
        %v1104 = vadd.f32 %v999, %v1103
        %v1105 = vpop.f32.mrf.mxu0
        %1106 = vmatprep.mubr.f32.mxu0 0.0
        %1107 = vmatmul.mubr.f32.gmra.mxu0 %v884
        %v1108 = vpop.f32.mrf.mxu0
        %v1109 = vadd.f32 %v1004, %v1108
        %v1110 = vpop.f32.mrf.mxu0
        %1111 = vdwg.mxu0
        %v1112 = vld [vmem:[%s485] sm:$0xff]
        %v1114 = vcombine.high %v1112, %v1112
        %v1116 = vunpack.c.l.s4 1966171168
        %v1117 = vunpack.c.0.s8 %v1116
        %v1118 = vlaneseq
        %v1119 = vshrl.u32 %v1118, 7
        %v1120 = vsub.s32 %v1117, %v1119
        %v1121 = vrot.slane %v1112, %v1120
        %v1123 = vunpack.c.l.s4 1966171168
        %v1124 = vunpack.c.0.s8 %v1123
        %v1125 = vlaneseq
        %v1126 = vshrl.u32 %v1125, 7
        %v1127 = vsub.s32 %v1124, %v1126
        %v1128 = vrot.slane %v1114, %v1127
        %v1129 = vcombine.high %v1121, %v1121
        %v1130 = vcombine.high %v1128, %v1128
        %v1132 = vunpack.c.l.s4 1966171168
        %v1133 = vunpack.c.0.s8 %v1132
        %v1134 = vlaneseq
        %v1135 = vshrl.u32 %v1134, 7
        %v1136 = vsub.s32 %v1133, %v1135
        %v1137 = vrot.slane %v1121, %v1136
        %v1139 = vunpack.c.l.s4 1966171168
        %v1140 = vunpack.c.0.s8 %v1139
        %v1141 = vlaneseq
        %v1142 = vshrl.u32 %v1141, 7
        %v1143 = vsub.s32 %v1140, %v1142
        %v1144 = vrot.slane %v1128, %v1143
        %v1146 = vunpack.c.l.s4 1966171168
        %v1147 = vunpack.c.0.s8 %v1146
        %v1148 = vlaneseq
        %v1149 = vshrl.u32 %v1148, 7
        %v1150 = vsub.s32 %v1147, %v1149
        %v1151 = vrot.slane %v1129, %v1150
        %v1153 = vunpack.c.l.s4 1966171168
        %v1154 = vunpack.c.0.s8 %v1153
        %v1155 = vlaneseq
        %v1156 = vshrl.u32 %v1155, 7
        %v1157 = vsub.s32 %v1154, %v1156
        %v1158 = vrot.slane %v1130, %v1157
        %v1159 = vcombine.high %v1137, %v1137
        %v1160 = vcombine.high %v1144, %v1144
        %v1161 = vcombine.high %v1151, %v1151
        %v1162 = vcombine.high %v1158, %v1158
        %v1163 = vlaneseq
        %v1164 = vshrl.u32 %v1163, 7
        %v1165 = vsub.s32 0, %v1164
        %v1166 = vrot.slane %v1137, %v1165
        %v1167 = vlaneseq
        %v1168 = vshrl.u32 %v1167, 7
        %v1169 = vsub.s32 0, %v1168
        %v1170 = vrot.slane %v1151, %v1169
        %v1171 = vlaneseq
        %v1172 = vshrl.u32 %v1171, 7
        %v1173 = vsub.s32 0, %v1172
        %v1174 = vrot.slane %v1159, %v1173
        %v1175 = vlaneseq
        %v1176 = vshrl.u32 %v1175, 7
        %v1177 = vsub.s32 0, %v1176
        %v1178 = vrot.slane %v1161, %v1177
        %v1179 = vlaneseq
        %v1180 = vshrl.u32 %v1179, 7
        %v1181 = vsub.s32 0, %v1180
        %v1182 = vrot.slane %v1144, %v1181
        %v1183 = vlaneseq
        %v1184 = vshrl.u32 %v1183, 7
        %v1185 = vsub.s32 0, %v1184
        %v1186 = vrot.slane %v1158, %v1185
        %v1187 = vlaneseq
        %v1188 = vshrl.u32 %v1187, 7
        %v1189 = vsub.s32 0, %v1188
        %v1190 = vrot.slane %v1160, %v1189
        %v1191 = vlaneseq
        %v1192 = vshrl.u32 %v1191, 7
        %v1193 = vsub.s32 0, %v1192
        %v1194 = vrot.slane %v1162, %v1193
        %v1203 = vadd.f32 %v1074, %v1166
        %v1204 = vadd.f32 %v1079, %v1170
        %v1205 = vadd.f32 %v1084, %v1174
        %v1206 = vadd.f32 %v1089, %v1178
        %v1207 = vadd.f32 %v1094, %v1182
        %v1208 = vadd.f32 %v1099, %v1186
        %v1209 = vadd.f32 %v1104, %v1190
        %v1210 = vadd.f32 %v1109, %v1194
        %v1211 = vld [vmem:[%s492] sm:$0xff]
        %v1212 = vadd.f32 %v1203, %v1211
        %v1213 = vadd.f32 %v1204, %v1211
        %v1214 = vadd.f32 %v1205, %v1211
        %v1215 = vadd.f32 %v1206, %v1211
        %v1216 = vadd.f32 %v1207, %v1211
        %v1217 = vadd.f32 %v1208, %v1211
        %v1218 = vadd.f32 %v1209, %v1211
        %v1219 = vadd.f32 %v1210, %v1211
        %vm1220 = vcmask 130048
        %v1221 = vsel %vm1220, %v1212, 0.0
        %1222 = vadd.xlane.f32.xlu0 %v1221
        %v1223 = vpop.xlane.xlu0 %1222
        %v1224 = vsel %vm1220, %v1213, 0.0
        %1225 = vadd.xlane.f32.xlu0 %v1224
        %v1226 = vpop.xlane.xlu0 %1225
        %v1227 = vsel %vm1220, %v1214, 0.0
        %1228 = vadd.xlane.f32.xlu0 %v1227
        %v1229 = vpop.xlane.xlu0 %1228
        %v1230 = vsel %vm1220, %v1215, 0.0
        %1231 = vadd.xlane.f32.xlu0 %v1230
        %v1232 = vpop.xlane.xlu0 %1231
        %v1233 = vsel %vm1220, %v1216, 0.0
        %1234 = vadd.xlane.f32.xlu0 %v1233
        %v1235 = vpop.xlane.xlu0 %1234
        %v1236 = vsel %vm1220, %v1217, 0.0
        %1237 = vadd.xlane.f32.xlu0 %v1236
        %v1238 = vpop.xlane.xlu0 %1237
        %v1239 = vsel %vm1220, %v1218, 0.0
        %1240 = vadd.xlane.f32.xlu0 %v1239
        %v1241 = vpop.xlane.xlu0 %1240
        %v1242 = vsel %vm1220, %v1219, 0.0
        %1243 = vadd.xlane.f32.xlu0 %v1242
        %v1244 = vpop.xlane.xlu0 %1243
        %v1245 = vmul.f32 %v1212, %v1212
        %v1246 = vmul.f32 %v1213, %v1213
        %v1247 = vmul.f32 %v1214, %v1214
        %v1248 = vmul.f32 %v1215, %v1215
        %v1249 = vmul.f32 %v1216, %v1216
        %v1250 = vmul.f32 %v1217, %v1217
        %v1251 = vmul.f32 %v1218, %v1218
        %v1252 = vmul.f32 %v1219, %v1219
        %v1253 = vsel %vm1220, %v1245, 0.0
        %1254 = vadd.xlane.f32.xlu0 %v1253
        %v1255 = vpop.xlane.xlu0 %1254
        %v1256 = vsel %vm1220, %v1246, 0.0
        %1257 = vadd.xlane.f32.xlu0 %v1256
        %v1258 = vpop.xlane.xlu0 %1257
        %v1259 = vsel %vm1220, %v1247, 0.0
        %1260 = vadd.xlane.f32.xlu0 %v1259
        %v1261 = vpop.xlane.xlu0 %1260
        %v1262 = vsel %vm1220, %v1248, 0.0
        %1263 = vadd.xlane.f32.xlu0 %v1262
        %v1264 = vpop.xlane.xlu0 %1263
        %v1265 = vsel %vm1220, %v1249, 0.0
        %1266 = vadd.xlane.f32.xlu0 %v1265
        %v1267 = vpop.xlane.xlu0 %1266
        %v1268 = vsel %vm1220, %v1250, 0.0
        %1269 = vadd.xlane.f32.xlu0 %v1268
        %v1270 = vpop.xlane.xlu0 %1269
        %v1271 = vsel %vm1220, %v1251, 0.0
        %1272 = vadd.xlane.f32.xlu0 %v1271
        %v1273 = vpop.xlane.xlu0 %1272
        %v1274 = vsel %vm1220, %v1252, 0.0
        %1275 = vadd.xlane.f32.xlu0 %v1274
        %v1276 = vpop.xlane.xlu0 %1275
        %v1277 = vmul.f32 %v1223, 0.0625
        %v1278 = vmul.f32 %v1226, 0.0625
        %v1279 = vmul.f32 %v1229, 0.0625
        %v1280 = vmul.f32 %v1232, 0.0625
        %v1281 = vmul.f32 %v1235, 0.0625
        %v1282 = vmul.f32 %v1238, 0.0625
        %v1283 = vmul.f32 %v1241, 0.0625
        %v1284 = vmul.f32 %v1244, 0.0625
        %v1285 = vmul.f32 %v1255, 0.0625
        %v1286 = vmul.f32 %v1258, 0.0625
        %v1287 = vmul.f32 %v1261, 0.0625
        %v1288 = vmul.f32 %v1264, 0.0625
        %v1289 = vmul.f32 %v1267, 0.0625
        %v1290 = vmul.f32 %v1270, 0.0625
        %v1291 = vmul.f32 %v1273, 0.0625
        %v1292 = vmul.f32 %v1276, 0.0625
        %v1293 = vmul.f32 %v1277, %v1277
        %v1294 = vmul.f32 %v1278, %v1278
        %v1295 = vmul.f32 %v1279, %v1279
        %v1296 = vmul.f32 %v1280, %v1280
        %v1297 = vmul.f32 %v1281, %v1281
        %v1298 = vmul.f32 %v1282, %v1282
        %v1299 = vmul.f32 %v1283, %v1283
        %v1300 = vmul.f32 %v1284, %v1284
        %v1301 = vsub.f32 %v1285, %v1293
        %v1302 = vsub.f32 %v1286, %v1294
        %v1303 = vsub.f32 %v1287, %v1295
        %v1304 = vsub.f32 %v1288, %v1296
        %v1305 = vsub.f32 %v1289, %v1297
        %v1306 = vsub.f32 %v1290, %v1298
        %v1307 = vsub.f32 %v1291, %v1299
        %v1308 = vsub.f32 %v1292, %v1300
        %v1309 = vmax.f32 %v1301, 0.0
        %v1310 = vmax.f32 %v1302, 0.0
        %v1311 = vmax.f32 %v1303, 0.0
        %v1312 = vmax.f32 %v1304, 0.0
        %v1313 = vmax.f32 %v1305, 0.0
        %v1314 = vmax.f32 %v1306, 0.0
        %v1315 = vmax.f32 %v1307, 0.0
        %v1316 = vmax.f32 %v1308, 0.0
        %v1317 = vsub.f32 %v1212, %v1277
        %v1318 = vsub.f32 %v1213, %v1278
        %v1319 = vsub.f32 %v1214, %v1279
        %v1320 = vsub.f32 %v1215, %v1280
        %v1321 = vsub.f32 %v1216, %v1281
        %v1322 = vsub.f32 %v1217, %v1282
        %v1323 = vsub.f32 %v1218, %v1283
        %v1324 = vsub.f32 %v1219, %v1284
        %v1325 = vadd.f32 %v1309, 1e-05
        %v1326 = vadd.f32 %v1310, 1e-05
        %v1327 = vadd.f32 %v1311, 1e-05
        %v1328 = vadd.f32 %v1312, 1e-05
        %v1329 = vadd.f32 %v1313, 1e-05
        %v1330 = vadd.f32 %v1314, 1e-05
        %v1331 = vadd.f32 %v1315, 1e-05
        %v1332 = vadd.f32 %v1316, 1e-05
        %v1333 = vrsqrt.pop %v1325
        %v1334 = vrsqrt.pop %v1326
        %v1335 = vrsqrt.pop %v1327
        %v1336 = vrsqrt.pop %v1328
        %v1337 = vrsqrt.pop %v1329
        %v1338 = vrsqrt.pop %v1330
        %v1339 = vrsqrt.pop %v1331
        %v1340 = vrsqrt.pop %v1332
        %v1341 = vmul.f32 %v1317, %v1333
        %v1342 = vmul.f32 %v1318, %v1334
        %v1343 = vmul.f32 %v1319, %v1335
        %v1344 = vmul.f32 %v1320, %v1336
        %v1345 = vmul.f32 %v1321, %v1337
        %v1346 = vmul.f32 %v1322, %v1338
        %v1347 = vmul.f32 %v1323, %v1339
        %v1348 = vmul.f32 %v1324, %v1340
        %v1349 = vld [vmem:[%s8] sm:$0x1]
        %v1350 = vlaneseq
        %v1351 = vshrl.u32 %v1350, 7
        %v1352 = vsub.s32 0, %v1351
        %v1353 = vrot.slane %v1349, %v1352
        %v1354 = vmul.f32 %v1341, %v1353
        %v1355 = vmul.f32 %v1342, %v1353
        %v1356 = vmul.f32 %v1343, %v1353
        %v1357 = vmul.f32 %v1344, %v1353
        %v1358 = vmul.f32 %v1345, %v1353
        %v1359 = vmul.f32 %v1346, %v1353
        %v1360 = vmul.f32 %v1347, %v1353
        %v1361 = vmul.f32 %v1348, %v1353
        %v1362 = vld [vmem:[%s8 + $0x1] sm:$0x1]
        %v1363 = vlaneseq
        %v1364 = vshrl.u32 %v1363, 7
        %v1365 = vsub.s32 0, %v1364
        %v1366 = vrot.slane %v1362, %v1365
        %v1367 = vadd.f32 %v1354, %v1366
        %v1368 = vadd.f32 %v1355, %v1366
        %v1369 = vadd.f32 %v1356, %v1366
        %v1370 = vadd.f32 %v1357, %v1366
        %v1371 = vadd.f32 %v1358, %v1366
        %v1372 = vadd.f32 %v1359, %v1366
        %v1373 = vadd.f32 %v1360, %v1366
        %v1374 = vadd.f32 %v1361, %v1366
        %1375 = vst.msk [vmem:[%s451] sm:$0xff] %vm1220, %v1367
        %1376 = vst.msk [vmem:[%s451 + $0x8] sm:$0xff] %vm1220, %v1368
        %1377 = vst.msk [vmem:[%s451 + $0x10] sm:$0xff] %vm1220, %v1369
        %1378 = vst.msk [vmem:[%s451 + $0x18] sm:$0xff] %vm1220, %v1370
        %1379 = vst.msk [vmem:[%s451 + $0x20] sm:$0xff] %vm1220, %v1371
        %1380 = vst.msk [vmem:[%s451 + $0x28] sm:$0xff] %vm1220, %v1372
        %1381 = vst.msk [vmem:[%s451 + $0x30] sm:$0xff] %vm1220, %v1373
        %1382 = vst.msk [vmem:[%s451 + $0x38] sm:$0xff] %vm1220, %v1374
        %s1383 = sand.u32 %s280, 1
        %s1384 = scalar_lea.sflag [#allocation3], %s1383
        %s1385 = sand.u32 %s280, 1
        %s1386 = smul.addr %s1385, 64
        %s1387 = scalar_lea.vmem [#allocation2], %s1386
        // Predicated region
        $region57: #{edge_transition_forward.1} parent=55 // pred_check
          %p1388 = pneg %p290
        $region58: #{edge_transition_forward.1} parent=55 // pred_check_branch
          %1390 = sbr.rel (%p1388) target = $region60
        $region59: #{edge_transition_forward.1} parent=55 // pred_region
          %s1391 = smul.u32 8, %s29
          %s1393 = ssub.s32 1024, 1024
          %1394 = vsyncadd %s1384, %s1393
          %s1395 = sadd.s32 %s30, %s1391
          %s1396 = smul.addr %s28, 8
          %s1397 = sadd.s32 %s1395, %s1396
          %s1398 = smul.addr %s1397, 128
          %s1399 = scalar_lea.hbm %s9, %s1398
          %s1400 = sshll.u32 %s1387, 4
          %s1401 = int_to_ptr.vmem [resolvable:$true] %s1400
          %1406 = dma.vmem_to_hbm [thread:$0]  %s1401, 1024, %s1399, %s1384, 128, 128, 8
        $region60: #{edge_transition_forward.1} parent=55 // pred_fallthru
          _
      $region56: #{edge_transition_forward.1} parent=5 // pred_fallthru
        _
      %p1407 = scmp.le.s32.totalorder 2, %s18
      // Predicated region
      $region61: #{edge_transition_forward.1} parent=5 // pred_check
        %p1408 = pneg %p1407
      $region62: #{edge_transition_forward.1} parent=5 // pred_check_branch
        %1410 = sbr.rel (%p1408) target = $region64
      $region63: #{edge_transition_forward.1} parent=5 // pred_region
        %s1411 = ssub.s32 %s18, 2
        // Predicated region
        $region65: #{edge_transition_forward.1} parent=63 // pred_check
          %p1412 = pneg %p296
        $region66: #{edge_transition_forward.1} parent=63 // pred_check_branch
          %1414 = sbr.rel (%p1412) target = $region68
        $region67: #{edge_transition_forward.1} parent=63 // pred_region
          %s1415 = sand.u32 %s281, 1
          %s1416 = scalar_lea.sflag [#allocation3], %s1415
          %s1417 = sand.u32 %s281, 1
          %s1418 = smul.addr %s1417, 64
          %s1419 = scalar_lea.vmem [#allocation2], %s1418
          %1420 = dma.done %s1416, 1024
        $region68: #{edge_transition_forward.1} parent=63 // pred_fallthru
          _
      $region64: #{edge_transition_forward.1} parent=5 // pred_fallthru
        _
    $region6: #{edge_transition_forward.1} parent=1 // loop_footer
      %s22 = sadd.s32 1, %s18
    $region7: #{edge_transition_forward.1} parent=1 // loop_footer_branch
      %17 = sbr.rel target = $region3
    $region8: #{edge_transition_forward.1} parent=1 // loop_exit
      _
    %1421 = vsyncpa [#allocation3], 1
    %s1422 = scalar_lea.sflag [#allocation3], 1
    %1423 = vsyncpa %s1422, 1

</llo_original>
